<compile_context>
chip_gen: v5e
topology: v5e:2x2
jax: 0.10.0
libtpu: 0.0.40
codegen_flags: <defaults>
</compile_context>

<pallas_src>
import jax
import jax.numpy as jnp
import numpy as np
from jax.experimental import pallas as pl
from jax.experimental.pallas import tpu as pltpu


def _encoder_kernel(x_ref, h0_ref, c0_ref, wih0_ref, wihr_ref, whh_ref, b_ref,
                    hN_ref, cN_ref,
                    y_sc, proj_sc, h_sc, c_sc):
    """Fused multi-layer LSTM encoder.  Grid = (num_layers,), 'arbitrary'.

    x_ref    : (T*B, D)     time-major input rows (row t*B+b = x[b, t, :])
    h0/c0    : (1, B, H)    this layer's initial states
    wih0_ref : (D, 4H)      layer-0 W_ih^T (resident; gate order i,f,g,o)
    wihr_ref : (1, H, 4H)   layer-l W_ih^T for l>=1 (entry 0 is an unused dummy)
    whh_ref  : (1, H, 4H)   layer-l W_hh^T
    b_ref    : (1, 1, 4H)   b_ih + b_hh
    hN/cN    : (1, B, H)    this layer's final states (written once)
    y_sc     : (T*B, H)     VMEM: this layer's outputs = next layer's inputs
    proj_sc  : (T*B, 4H)    VMEM: hoisted, batched input projections
    h_sc/c_sc: (B, H) f32   VMEM: recurrent carry
    """
    l = pl.program_id(0)
    batch, hidden = h_sc.shape
    seq_len = y_sc.shape[0] // batch

    # Per-layer initial state (h_0 / c_0 already broadcast to batch).
    h_sc[...] = h0_ref[0]
    c_sc[...] = c0_ref[0]

    whh = whh_ref[0]        # (H, 4H)
    bias = b_ref[0]         # (1, 4H)

    # ---- Hoisted, batched input projection: one MXU matmul per layer -------
    # All T*B rows at once -> sublanes packed, single MXU push sequence,
    # single bias broadcast.  Independent of the h-recurrence critical path.
    @pl.when(l == 0)
    def _():
        lhs = x_ref[...].astype(wih0_ref.dtype)          # (T*B, D)
        proj_sc[...] = (
            jnp.dot(lhs, wih0_ref[...], preferred_element_type=jnp.float32)
            + bias)

    @pl.when(l != 0)
    def _():
        lhs = y_sc[...].astype(wihr_ref.dtype)           # (T*B, H)
        proj_sc[...] = (
            jnp.dot(lhs, wihr_ref[0], preferred_element_type=jnp.float32)
            + bias)

    # ---- Serial time recurrence: only h @ W_hh^T on the critical path ------
    # T is small/fixed here -> full static unroll with static row slices.
    for t in range(seq_len):
        rows = pl.ds(t * batch, batch)
        gates = proj_sc[rows, :] + jnp.dot(
            h_sc[...].astype(whh.dtype), whh,
            preferred_element_type=jnp.float32)           # (B, 4H)

        # Fused nonlinearities at full (B, 4H) width: 2 EUP pushes per step.
        sg = jax.nn.sigmoid(gates)       # provides i, f, o lanes
        th = jnp.tanh(gates)             # provides g lanes
        i_g = sg[:, 0 * hidden:1 * hidden]
        f_g = sg[:, 1 * hidden:2 * hidden]
        g_g = th[:, 2 * hidden:3 * hidden]
        o_g = sg[:, 3 * hidden:4 * hidden]

        c_new = f_g * c_sc[...] + i_g * g_g
        h_new = o_g * jnp.tanh(c_new)
        h_sc[...] = h_new
        c_sc[...] = c_new

        # Unconditional VMEM write (next layer's input).  On the last layer
        # this is unused scratch traffic -- cheaper than T scf.ifs on the
        # serial chain.  Per-step hidden states never go to HBM.
        y_sc[rows, :] = h_new

    # Final states: a single HBM writeback per layer.
    hN_ref[0] = h_sc[...].astype(hN_ref.dtype)
    cN_ref[0] = c_sc[...].astype(cN_ref.dtype)


def encoder_forward(x_btd, params, h_0, c_0, *, mxu_dtype=jnp.float32):
    """Pallas Encoder forward.

    x_btd : (B, T, D)  batch-first input (matches the PyTorch module)
    params: list of per-layer dicts {wih_t (Din_l,4H), whh_t (H,4H), bias (1,4H)}
    h_0   : (num_layers, 1, H)  learned initial hidden state
    c_0   : (num_layers, 1, H)  learned initial cell state
    mxu_dtype: dtype for MXU operands (jnp.bfloat16 opt-in; accumulation and
               h/c carries stay f32 regardless).
    returns (h_n, c_n) each (num_layers, B, H)
    """
    B, T, D = x_btd.shape
    L = h_0.shape[0]
    H = h_0.shape[-1]
    G = 4 * H

    # Layer-0 input weights kept separate (no K-padding needed); layers >= 1
    # are stacked with a zero dummy at index 0 so the BlockSpec index map is
    # simply `l`.
    wih0 = params[0]["wih_t"].astype(mxu_dtype)                     # (D, G)
    if L > 1:
        rest = jnp.stack([params[l]["wih_t"] for l in range(1, L)], axis=0)
        wih_rest = jnp.concatenate(
            [jnp.zeros((1, H, G), rest.dtype), rest], axis=0)
    else:
        wih_rest = jnp.zeros((1, H, G), jnp.float32)
    wih_rest = wih_rest.astype(mxu_dtype)                           # (L, H, G)
    whh = jnp.stack([p["whh_t"] for p in params], axis=0).astype(mxu_dtype)
    bias = jnp.stack([p["bias"] for p in params], axis=0).astype(jnp.float32)

    # h_0.expand(-1, batch, -1) semantics.
    h_init = jnp.broadcast_to(h_0, (L, B, H)).astype(jnp.float32)
    c_init = jnp.broadcast_to(c_0, (L, B, H)).astype(jnp.float32)

    # batch-first -> time-major rows: row t*B + b = x[b, t, :].
    x_2d = jnp.transpose(x_btd, (1, 0, 2)).reshape(T * B, D).astype(jnp.float32)

    grid_spec = pltpu.PrefetchScalarGridSpec(
        num_scalar_prefetch=0,
        grid=(L,),
        in_specs=[
            pl.BlockSpec((T * B, D), lambda l: (0, 0)),     # x rows (resident)
            pl.BlockSpec((1, B, H), lambda l: (l, 0, 0)),   # h_0[l]
            pl.BlockSpec((1, B, H), lambda l: (l, 0, 0)),   # c_0[l]
            pl.BlockSpec((D, G), lambda l: (0, 0)),         # W_ih^T layer 0
            pl.BlockSpec((1, H, G), lambda l: (l, 0, 0)),   # W_ih^T layer l>=1
            pl.BlockSpec((1, H, G), lambda l: (l, 0, 0)),   # W_hh^T[l]
            pl.BlockSpec((1, 1, G), lambda l: (l, 0, 0)),   # bias[l]
        ],
        out_specs=[
            pl.BlockSpec((1, B, H), lambda l: (l, 0, 0)),   # h_n[l]
            pl.BlockSpec((1, B, H), lambda l: (l, 0, 0)),   # c_n[l]
        ],
        scratch_shapes=[
            pltpu.VMEM((T * B, H), jnp.float32),   # inter-layer activations
            pltpu.VMEM((T * B, G), jnp.float32),   # hoisted input projections
            pltpu.VMEM((B, H), jnp.float32),       # h carry
            pltpu.VMEM((B, H), jnp.float32),       # c carry
        ],
    )

    h_n, c_n = pl.pallas_call(
        _encoder_kernel,
        grid_spec=grid_spec,
        out_shape=(
            jax.ShapeDtypeStruct((L, B, H), jnp.float32),
            jax.ShapeDtypeStruct((L, B, H), jnp.float32),
        ),
        compiler_params=pltpu.CompilerParams(
            dimension_semantics=("arbitrary",),    # layers are sequential
            # Explicit limit: above v5e's 16 MiB scoped default, within every
            # generation's physical VMEM (v7x = 64 MiB).
            vmem_limit_bytes=32 * 1024 * 1024,
        ),
    )(x_2d, h_init, c_init, wih0, wih_rest, whh, bias)
    return h_n, c_n


# ----------------------------------------------------------------------------
# Pure-JAX reference (PyTorch LSTM semantics) for correctness checking.
# ----------------------------------------------------------------------------
def _reference_encoder(x_btd, params, h_0, c_0):
    B, T, _ = x_btd.shape
    num_layers = h_0.shape[0]
    H = h_0.shape[-1]
    h = jnp.broadcast_to(h_0, (num_layers, B, H))
    c = jnp.broadcast_to(c_0, (num_layers, B, H))
    layer_in = x_btd
    h_out, c_out = [], []
    for l in range(num_layers):
        wih_t = params[l]["wih_t"]; whh_t = params[l]["whh_t"]; b = params[l]["bias"]
        ht, ct = h[l], c[l]
        ys = []
        for t in range(T):
            gates = layer_in[:, t, :] @ wih_t + ht @ whh_t + b
            i = jax.nn.sigmoid(gates[:, 0 * H:1 * H])
            f = jax.nn.sigmoid(gates[:, 1 * H:2 * H])
            g = jnp.tanh(gates[:, 2 * H:3 * H])
            o = jax.nn.sigmoid(gates[:, 3 * H:4 * H])
            ct = f * ct + i * g
            ht = o * jnp.tanh(ct)
            ys.append(ht)
        layer_in = jnp.stack(ys, axis=1)
        h_out.append(ht); c_out.append(ct)
    return jnp.stack(h_out, axis=0), jnp.stack(c_out, axis=0)


if __name__ == "__main__":
    # Small shapes consistent with the module's forward:
    #   linear_output_size (LSTM input feature) = 32
    #   lstm_hidden_size = 32, lstm_num_layers = 2, batch = 2, seq = 8
    B, T = 2, 8
    D_IN = 32      # linear_output_size
    H = 32         # lstm_hidden_size
    NUM_LAYERS = 2

    key = jax.random.PRNGKey(0)
    keys = jax.random.split(key, 3 + 4 * NUM_LAYERS)

    x = jax.random.normal(keys[0], (B, T, D_IN), dtype=jnp.float32)
    h_0 = 0.1 * jax.random.normal(keys[1], (NUM_LAYERS, 1, H), dtype=jnp.float32)
    c_0 = 0.1 * jax.random.normal(keys[2], (NUM_LAYERS, 1, H), dtype=jnp.float32)

    # Deterministic parameter init (PyTorch shapes: weight_ih_l{l} (4H, Din_l),
    # weight_hh_l{l} (4H, H), biases (4H,)), gate order [i, f, g, o].
    params = []
    scale = 1.0 / np.sqrt(H)
    for l in range(NUM_LAYERS):
        din_l = D_IN if l == 0 else H
        k = keys[3 + 4 * l: 3 + 4 * (l + 1)]
        w_ih = scale * jax.random.normal(k[0], (4 * H, din_l), dtype=jnp.float32)
        w_hh = scale * jax.random.normal(k[1], (4 * H, H), dtype=jnp.float32)
        b_ih = scale * jax.random.normal(k[2], (4 * H,), dtype=jnp.float32)
        b_hh = scale * jax.random.normal(k[3], (4 * H,), dtype=jnp.float32)
        params.append({
            "wih_t": jnp.transpose(w_ih),             # (Din_l, 4H)
            "whh_t": jnp.transpose(w_hh),             # (H, 4H)
            "bias": (b_ih + b_hh).reshape(1, 4 * H),  # (1, 4H)
        })

    h_n, c_n = encoder_forward(x, params, h_0, c_0)
    jax.block_until_ready((h_n, c_n))

    # Sanity check vs. pure-JAX reference of the PyTorch LSTM math.
    h_ref, c_ref = _reference_encoder(x, params, h_0, c_0)
    np.testing.assert_allclose(np.asarray(h_n), np.asarray(h_ref), atol=1e-4, rtol=1e-4)
    np.testing.assert_allclose(np.asarray(c_n), np.asarray(c_ref), atol=1e-4, rtol=1e-4)

    assert h_n.shape == (NUM_LAYERS, B, H)
    assert c_n.shape == (NUM_LAYERS, B, H)

    print("KERNEL_OK")
</pallas_src>

<mosaic_0001>
module attributes {stable_mosaic.version = 11 : i64} {
  func.func @_encoder_kernel(%arg0: i32, %arg1: memref<16x32xf32, #tpu.memory_space<vmem>>, %arg2: memref<1x2x32xf32, #tpu.memory_space<vmem>>, %arg3: memref<1x2x32xf32, #tpu.memory_space<vmem>>, %arg4: memref<32x128xf32, #tpu.memory_space<vmem>>, %arg5: memref<1x32x128xf32, #tpu.memory_space<vmem>>, %arg6: memref<1x32x128xf32, #tpu.memory_space<vmem>>, %arg7: memref<1x1x128xf32, #tpu.memory_space<vmem>>, %arg8: memref<1x2x32xf32, #tpu.memory_space<vmem>>, %arg9: memref<1x2x32xf32, #tpu.memory_space<vmem>>, %arg10: memref<16x32xf32, #tpu.memory_space<vmem>>, %arg11: memref<16x128xf32, #tpu.memory_space<vmem>>, %arg12: memref<2x32xf32, #tpu.memory_space<vmem>>, %arg13: memref<2x32xf32, #tpu.memory_space<vmem>>) attributes {dimension_semantics = [#tpu.dimension_semantics<arbitrary>], iteration_bounds = array<i64: 2>, scalar_prefetch = 0 : i64, scratch_operands = 4 : i64, tpu.core_type = #tpu.core_type<tc>, window_params = [{pipeline_mode = #tpu.pipeline_mode<synchronous>, transform_indices = @transform_0, window_bounds = array<i64: 16, 32>}, {transform_indices = @transform_1, window_bounds = array<i64: 1, 2, 32>}, {transform_indices = @transform_2, window_bounds = array<i64: 1, 2, 32>}, {pipeline_mode = #tpu.pipeline_mode<synchronous>, transform_indices = @transform_3, window_bounds = array<i64: 32, 128>}, {transform_indices = @transform_4, window_bounds = array<i64: 1, 32, 128>}, {transform_indices = @transform_5, window_bounds = array<i64: 1, 32, 128>}, {transform_indices = @transform_6, window_bounds = array<i64: 1, 1, 128>}, {transform_indices = @transform_7, window_bounds = array<i64: 1, 2, 32>}, {transform_indices = @transform_8, window_bounds = array<i64: 1, 2, 32>}]} {
    %c0 = arith.constant 0 : index
    %c0_0 = arith.constant 0 : index
    %c0_1 = arith.constant 0 : index
    %0 = vector.load %arg2[%c0, %c0_0, %c0_1] : memref<1x2x32xf32, #tpu.memory_space<vmem>>, vector<1x2x32xf32>
    %1 = vector.shape_cast %0 : vector<1x2x32xf32> to vector<2x32xf32>
    %c0_2 = arith.constant 0 : index
    %c0_3 = arith.constant 0 : index
    %2 = vector.load %arg12[%c0_2, %c0_3] : memref<2x32xf32, #tpu.memory_space<vmem>>, vector<2x32xf32>
    tpu.vector_store %arg12[%c0_2, %c0_3], %1 {strides = array<i32>} : memref<2x32xf32, #tpu.memory_space<vmem>>, vector<2x32xf32>,
    %c0_4 = arith.constant 0 : index
    %c0_5 = arith.constant 0 : index
    %c0_6 = arith.constant 0 : index
    %3 = vector.load %arg3[%c0_4, %c0_5, %c0_6] : memref<1x2x32xf32, #tpu.memory_space<vmem>>, vector<1x2x32xf32>
    %4 = vector.shape_cast %3 : vector<1x2x32xf32> to vector<2x32xf32>
    %c0_7 = arith.constant 0 : index
    %c0_8 = arith.constant 0 : index
    %5 = vector.load %arg13[%c0_7, %c0_8] : memref<2x32xf32, #tpu.memory_space<vmem>>, vector<2x32xf32>
    tpu.vector_store %arg13[%c0_7, %c0_8], %4 {strides = array<i32>} : memref<2x32xf32, #tpu.memory_space<vmem>>, vector<2x32xf32>,
    %c0_9 = arith.constant 0 : index
    %c0_10 = arith.constant 0 : index
    %c0_11 = arith.constant 0 : index
    %6 = vector.load %arg6[%c0_9, %c0_10, %c0_11] : memref<1x32x128xf32, #tpu.memory_space<vmem>>, vector<1x32x128xf32>
    %7 = vector.shape_cast %6 : vector<1x32x128xf32> to vector<32x128xf32>
    %c0_12 = arith.constant 0 : index
    %c0_13 = arith.constant 0 : index
    %c0_14 = arith.constant 0 : index
    %8 = vector.load %arg7[%c0_12, %c0_13, %c0_14] : memref<1x1x128xf32, #tpu.memory_space<vmem>>, vector<1x1x128xf32>
    %9 = vector.shape_cast %8 : vector<1x1x128xf32> to vector<1x128xf32>
    %c0_i32 = arith.constant 0 : i32
    %10 = arith.cmpi eq, %arg0, %c0_i32 : i32
    %11 = arith.extui %10 : i1 to i32
    %c0_i32_15 = arith.constant 0 : i32
    %12 = arith.cmpi ne, %11, %c0_i32_15 : i32
    scf.if %12 {
      %c0_132 = arith.constant 0 : index
      %c0_133 = arith.constant 0 : index
      %208 = vector.load %arg1[%c0_132, %c0_133] : memref<16x32xf32, #tpu.memory_space<vmem>>, vector<16x32xf32>
      %c0_134 = arith.constant 0 : index
      %c0_135 = arith.constant 0 : index
      %209 = vector.load %arg4[%c0_134, %c0_135] : memref<32x128xf32, #tpu.memory_space<vmem>>, vector<32x128xf32>
      %cst_136 = arith.constant dense<0.000000e+00> : vector<16x128xf32>
      %210 = tpu.matmul %208, %209, %cst_136 {dimension_numbers = #tpu.dot_dimension_numbers<[1], [0], [0], [1], [0, 0, 1, 1], [], []>} : vector<16x32xf32>, vector<32x128xf32>, vector<16x128xf32> -> vector<16x128xf32>
      %211 = vector.broadcast %9 : vector<1x128xf32> to vector<16x128xf32>
      %212 = arith.addf %210, %211 : vector<16x128xf32>
      %c0_137 = arith.constant 0 : index
      %c0_138 = arith.constant 0 : index
      %213 = vector.load %arg11[%c0_137, %c0_138] : memref<16x128xf32, #tpu.memory_space<vmem>>, vector<16x128xf32>
      tpu.vector_store %arg11[%c0_137, %c0_138], %212 {strides = array<i32>} : memref<16x128xf32, #tpu.memory_space<vmem>>, vector<16x128xf32>,
    } else {
    }
    %c0_i32_16 = arith.constant 0 : i32
    %13 = arith.cmpi ne, %arg0, %c0_i32_16 : i32
    %14 = arith.extui %13 : i1 to i32
    %c0_i32_17 = arith.constant 0 : i32
    %15 = arith.cmpi ne, %14, %c0_i32_17 : i32
    scf.if %15 {
      %c0_132 = arith.constant 0 : index
      %c0_133 = arith.constant 0 : index
      %208 = vector.load %arg10[%c0_132, %c0_133] : memref<16x32xf32, #tpu.memory_space<vmem>>, vector<16x32xf32>
      %c0_134 = arith.constant 0 : index
      %c0_135 = arith.constant 0 : index
      %c0_136 = arith.constant 0 : index
      %209 = vector.load %arg5[%c0_134, %c0_135, %c0_136] : memref<1x32x128xf32, #tpu.memory_space<vmem>>, vector<1x32x128xf32>
      %210 = vector.shape_cast %209 : vector<1x32x128xf32> to vector<32x128xf32>
      %cst_137 = arith.constant dense<0.000000e+00> : vector<16x128xf32>
      %211 = tpu.matmul %208, %210, %cst_137 {dimension_numbers = #tpu.dot_dimension_numbers<[1], [0], [0], [1], [0, 0, 1, 1], [], []>} : vector<16x32xf32>, vector<32x128xf32>, vector<16x128xf32> -> vector<16x128xf32>
      %212 = vector.broadcast %9 : vector<1x128xf32> to vector<16x128xf32>
      %213 = arith.addf %211, %212 : vector<16x128xf32>
      %c0_138 = arith.constant 0 : index
      %c0_139 = arith.constant 0 : index
      %214 = vector.load %arg11[%c0_138, %c0_139] : memref<16x128xf32, #tpu.memory_space<vmem>>, vector<16x128xf32>
      tpu.vector_store %arg11[%c0_138, %c0_139], %213 {strides = array<i32>} : memref<16x128xf32, #tpu.memory_space<vmem>>, vector<16x128xf32>,
    } else {
    }
    %c0_18 = arith.constant 0 : index
    %c0_19 = arith.constant 0 : index
    %16 = vector.load %arg11[%c0_18, %c0_19] : memref<16x128xf32, #tpu.memory_space<vmem>>, vector<2x128xf32>
    %c0_20 = arith.constant 0 : index
    %c0_21 = arith.constant 0 : index
    %17 = vector.load %arg12[%c0_20, %c0_21] : memref<2x32xf32, #tpu.memory_space<vmem>>, vector<2x32xf32>
    %cst = arith.constant dense<0.000000e+00> : vector<2x128xf32>
    %18 = tpu.matmul %17, %7, %cst {dimension_numbers = #tpu.dot_dimension_numbers<[1], [0], [0], [1], [0, 0, 1, 1], [], []>} : vector<2x32xf32>, vector<32x128xf32>, vector<2x128xf32> -> vector<2x128xf32>
    %19 = arith.addf %16, %18 : vector<2x128xf32>
    %20 = arith.negf %19 : vector<2x128xf32>
    %21 = math.exp %20 : vector<2x128xf32>
    %cst_22 = arith.constant 1.000000e+00 : f32
    %22 = vector.broadcast %cst_22 : f32 to vector<2x128xf32>
    %23 = arith.addf %22, %21 : vector<2x128xf32>
    %24 = arith.divf %22, %23 : vector<2x128xf32>
    %25 = math.tanh %19 : vector<2x128xf32>
    %26 = vector.extract_strided_slice %24 {offsets = [0, 0], sizes = [2, 32], strides = [1, 1]} : vector<2x128xf32> to vector<2x32xf32>
    %27 = vector.extract_strided_slice %24 {offsets = [0, 32], sizes = [2, 32], strides = [1, 1]} : vector<2x128xf32> to vector<2x32xf32>
    %28 = vector.extract_strided_slice %25 {offsets = [0, 64], sizes = [2, 32], strides = [1, 1]} : vector<2x128xf32> to vector<2x32xf32>
    %29 = vector.extract_strided_slice %24 {offsets = [0, 96], sizes = [2, 32], strides = [1, 1]} : vector<2x128xf32> to vector<2x32xf32>
    %c0_23 = arith.constant 0 : index
    %c0_24 = arith.constant 0 : index
    %30 = vector.load %arg13[%c0_23, %c0_24] : memref<2x32xf32, #tpu.memory_space<vmem>>, vector<2x32xf32>
    %31 = arith.mulf %27, %30 : vector<2x32xf32>
    %32 = arith.mulf %26, %28 : vector<2x32xf32>
    %33 = arith.addf %31, %32 : vector<2x32xf32>
    %34 = math.tanh %33 : vector<2x32xf32>
    %35 = arith.mulf %29, %34 : vector<2x32xf32>
    %c0_25 = arith.constant 0 : index
    %c0_26 = arith.constant 0 : index
    %36 = vector.load %arg12[%c0_25, %c0_26] : memref<2x32xf32, #tpu.memory_space<vmem>>, vector<2x32xf32>
    tpu.vector_store %arg12[%c0_25, %c0_26], %35 {strides = array<i32>} : memref<2x32xf32, #tpu.memory_space<vmem>>, vector<2x32xf32>,
    %c0_27 = arith.constant 0 : index
    %c0_28 = arith.constant 0 : index
    %37 = vector.load %arg13[%c0_27, %c0_28] : memref<2x32xf32, #tpu.memory_space<vmem>>, vector<2x32xf32>
    tpu.vector_store %arg13[%c0_27, %c0_28], %33 {strides = array<i32>} : memref<2x32xf32, #tpu.memory_space<vmem>>, vector<2x32xf32>,
    %c0_29 = arith.constant 0 : index
    %c0_30 = arith.constant 0 : index
    %38 = vector.load %arg10[%c0_29, %c0_30] : memref<16x32xf32, #tpu.memory_space<vmem>>, vector<2x32xf32>
    tpu.vector_store %arg10[%c0_29, %c0_30], %35 {strides = array<i32>} : memref<16x32xf32, #tpu.memory_space<vmem>>, vector<2x32xf32>,
    %c2 = arith.constant 2 : index
    %c0_31 = arith.constant 0 : index
    %39 = vector.load %arg11[%c2, %c0_31] : memref<16x128xf32, #tpu.memory_space<vmem>>, vector<2x128xf32>
    %c0_32 = arith.constant 0 : index
    %c0_33 = arith.constant 0 : index
    %40 = vector.load %arg12[%c0_32, %c0_33] : memref<2x32xf32, #tpu.memory_space<vmem>>, vector<2x32xf32>
    %cst_34 = arith.constant dense<0.000000e+00> : vector<2x128xf32>
    %41 = tpu.matmul %40, %7, %cst_34 {dimension_numbers = #tpu.dot_dimension_numbers<[1], [0], [0], [1], [0, 0, 1, 1], [], []>} : vector<2x32xf32>, vector<32x128xf32>, vector<2x128xf32> -> vector<2x128xf32>
    %42 = arith.addf %39, %41 : vector<2x128xf32>
    %43 = arith.negf %42 : vector<2x128xf32>
    %44 = math.exp %43 : vector<2x128xf32>
    %cst_35 = arith.constant 1.000000e+00 : f32
    %45 = vector.broadcast %cst_35 : f32 to vector<2x128xf32>
    %46 = arith.addf %45, %44 : vector<2x128xf32>
    %47 = arith.divf %45, %46 : vector<2x128xf32>
    %48 = math.tanh %42 : vector<2x128xf32>
    %49 = vector.extract_strided_slice %47 {offsets = [0, 0], sizes = [2, 32], strides = [1, 1]} : vector<2x128xf32> to vector<2x32xf32>
    %50 = vector.extract_strided_slice %47 {offsets = [0, 32], sizes = [2, 32], strides = [1, 1]} : vector<2x128xf32> to vector<2x32xf32>
    %51 = vector.extract_strided_slice %48 {offsets = [0, 64], sizes = [2, 32], strides = [1, 1]} : vector<2x128xf32> to vector<2x32xf32>
    %52 = vector.extract_strided_slice %47 {offsets = [0, 96], sizes = [2, 32], strides = [1, 1]} : vector<2x128xf32> to vector<2x32xf32>
    %c0_36 = arith.constant 0 : index
    %c0_37 = arith.constant 0 : index
    %53 = vector.load %arg13[%c0_36, %c0_37] : memref<2x32xf32, #tpu.memory_space<vmem>>, vector<2x32xf32>
    %54 = arith.mulf %50, %53 : vector<2x32xf32>
    %55 = arith.mulf %49, %51 : vector<2x32xf32>
    %56 = arith.addf %54, %55 : vector<2x32xf32>
    %57 = math.tanh %56 : vector<2x32xf32>
    %58 = arith.mulf %52, %57 : vector<2x32xf32>
    %c0_38 = arith.constant 0 : index
    %c0_39 = arith.constant 0 : index
    %59 = vector.load %arg12[%c0_38, %c0_39] : memref<2x32xf32, #tpu.memory_space<vmem>>, vector<2x32xf32>
    tpu.vector_store %arg12[%c0_38, %c0_39], %58 {strides = array<i32>} : memref<2x32xf32, #tpu.memory_space<vmem>>, vector<2x32xf32>,
    %c0_40 = arith.constant 0 : index
    %c0_41 = arith.constant 0 : index
    %60 = vector.load %arg13[%c0_40, %c0_41] : memref<2x32xf32, #tpu.memory_space<vmem>>, vector<2x32xf32>
    tpu.vector_store %arg13[%c0_40, %c0_41], %56 {strides = array<i32>} : memref<2x32xf32, #tpu.memory_space<vmem>>, vector<2x32xf32>,
    %c2_42 = arith.constant 2 : index
    %c0_43 = arith.constant 0 : index
    %61 = vector.load %arg10[%c2_42, %c0_43] : memref<16x32xf32, #tpu.memory_space<vmem>>, vector<2x32xf32>
    tpu.vector_store %arg10[%c2_42, %c0_43], %58 {strides = array<i32>} : memref<16x32xf32, #tpu.memory_space<vmem>>, vector<2x32xf32>,
    %c4 = arith.constant 4 : index
    %c0_44 = arith.constant 0 : index
    %62 = vector.load %arg11[%c4, %c0_44] : memref<16x128xf32, #tpu.memory_space<vmem>>, vector<2x128xf32>
    %c0_45 = arith.constant 0 : index
    %c0_46 = arith.constant 0 : index
    %63 = vector.load %arg12[%c0_45, %c0_46] : memref<2x32xf32, #tpu.memory_space<vmem>>, vector<2x32xf32>
    %cst_47 = arith.constant dense<0.000000e+00> : vector<2x128xf32>
    %64 = tpu.matmul %63, %7, %cst_47 {dimension_numbers = #tpu.dot_dimension_numbers<[1], [0], [0], [1], [0, 0, 1, 1], [], []>} : vector<2x32xf32>, vector<32x128xf32>, vector<2x128xf32> -> vector<2x128xf32>
    %65 = arith.addf %62, %64 : vector<2x128xf32>
    %66 = arith.negf %65 : vector<2x128xf32>
    %67 = math.exp %66 : vector<2x128xf32>
    %cst_48 = arith.constant 1.000000e+00 : f32
    %68 = vector.broadcast %cst_48 : f32 to vector<2x128xf32>
    %69 = arith.addf %68, %67 : vector<2x128xf32>
    %70 = arith.divf %68, %69 : vector<2x128xf32>
    %71 = math.tanh %65 : vector<2x128xf32>
    %72 = vector.extract_strided_slice %70 {offsets = [0, 0], sizes = [2, 32], strides = [1, 1]} : vector<2x128xf32> to vector<2x32xf32>
    %73 = vector.extract_strided_slice %70 {offsets = [0, 32], sizes = [2, 32], strides = [1, 1]} : vector<2x128xf32> to vector<2x32xf32>
    %74 = vector.extract_strided_slice %71 {offsets = [0, 64], sizes = [2, 32], strides = [1, 1]} : vector<2x128xf32> to vector<2x32xf32>
    %75 = vector.extract_strided_slice %70 {offsets = [0, 96], sizes = [2, 32], strides = [1, 1]} : vector<2x128xf32> to vector<2x32xf32>
    %c0_49 = arith.constant 0 : index
    %c0_50 = arith.constant 0 : index
    %76 = vector.load %arg13[%c0_49, %c0_50] : memref<2x32xf32, #tpu.memory_space<vmem>>, vector<2x32xf32>
    %77 = arith.mulf %73, %76 : vector<2x32xf32>
    %78 = arith.mulf %72, %74 : vector<2x32xf32>
    %79 = arith.addf %77, %78 : vector<2x32xf32>
    %80 = math.tanh %79 : vector<2x32xf32>
    %81 = arith.mulf %75, %80 : vector<2x32xf32>
    %c0_51 = arith.constant 0 : index
    %c0_52 = arith.constant 0 : index
    %82 = vector.load %arg12[%c0_51, %c0_52] : memref<2x32xf32, #tpu.memory_space<vmem>>, vector<2x32xf32>
    tpu.vector_store %arg12[%c0_51, %c0_52], %81 {strides = array<i32>} : memref<2x32xf32, #tpu.memory_space<vmem>>, vector<2x32xf32>,
    %c0_53 = arith.constant 0 : index
    %c0_54 = arith.constant 0 : index
    %83 = vector.load %arg13[%c0_53, %c0_54] : memref<2x32xf32, #tpu.memory_space<vmem>>, vector<2x32xf32>
    tpu.vector_store %arg13[%c0_53, %c0_54], %79 {strides = array<i32>} : memref<2x32xf32, #tpu.memory_space<vmem>>, vector<2x32xf32>,
    %c4_55 = arith.constant 4 : index
    %c0_56 = arith.constant 0 : index
    %84 = vector.load %arg10[%c4_55, %c0_56] : memref<16x32xf32, #tpu.memory_space<vmem>>, vector<2x32xf32>
    tpu.vector_store %arg10[%c4_55, %c0_56], %81 {strides = array<i32>} : memref<16x32xf32, #tpu.memory_space<vmem>>, vector<2x32xf32>,
    %c6 = arith.constant 6 : index
    %c0_57 = arith.constant 0 : index
    %85 = vector.load %arg11[%c6, %c0_57] : memref<16x128xf32, #tpu.memory_space<vmem>>, vector<2x128xf32>
    %c0_58 = arith.constant 0 : index
    %c0_59 = arith.constant 0 : index
    %86 = vector.load %arg12[%c0_58, %c0_59] : memref<2x32xf32, #tpu.memory_space<vmem>>, vector<2x32xf32>
    %cst_60 = arith.constant dense<0.000000e+00> : vector<2x128xf32>
    %87 = tpu.matmul %86, %7, %cst_60 {dimension_numbers = #tpu.dot_dimension_numbers<[1], [0], [0], [1], [0, 0, 1, 1], [], []>} : vector<2x32xf32>, vector<32x128xf32>, vector<2x128xf32> -> vector<2x128xf32>
    %88 = arith.addf %85, %87 : vector<2x128xf32>
    %89 = arith.negf %88 : vector<2x128xf32>
    %90 = math.exp %89 : vector<2x128xf32>
    %cst_61 = arith.constant 1.000000e+00 : f32
    %91 = vector.broadcast %cst_61 : f32 to vector<2x128xf32>
    %92 = arith.addf %91, %90 : vector<2x128xf32>
    %93 = arith.divf %91, %92 : vector<2x128xf32>
    %94 = math.tanh %88 : vector<2x128xf32>
    %95 = vector.extract_strided_slice %93 {offsets = [0, 0], sizes = [2, 32], strides = [1, 1]} : vector<2x128xf32> to vector<2x32xf32>
    %96 = vector.extract_strided_slice %93 {offsets = [0, 32], sizes = [2, 32], strides = [1, 1]} : vector<2x128xf32> to vector<2x32xf32>
    %97 = vector.extract_strided_slice %94 {offsets = [0, 64], sizes = [2, 32], strides = [1, 1]} : vector<2x128xf32> to vector<2x32xf32>
    %98 = vector.extract_strided_slice %93 {offsets = [0, 96], sizes = [2, 32], strides = [1, 1]} : vector<2x128xf32> to vector<2x32xf32>
    %c0_62 = arith.constant 0 : index
    %c0_63 = arith.constant 0 : index
    %99 = vector.load %arg13[%c0_62, %c0_63] : memref<2x32xf32, #tpu.memory_space<vmem>>, vector<2x32xf32>
    %100 = arith.mulf %96, %99 : vector<2x32xf32>
    %101 = arith.mulf %95, %97 : vector<2x32xf32>
    %102 = arith.addf %100, %101 : vector<2x32xf32>
    %103 = math.tanh %102 : vector<2x32xf32>
    %104 = arith.mulf %98, %103 : vector<2x32xf32>
    %c0_64 = arith.constant 0 : index
    %c0_65 = arith.constant 0 : index
    %105 = vector.load %arg12[%c0_64, %c0_65] : memref<2x32xf32, #tpu.memory_space<vmem>>, vector<2x32xf32>
    tpu.vector_store %arg12[%c0_64, %c0_65], %104 {strides = array<i32>} : memref<2x32xf32, #tpu.memory_space<vmem>>, vector<2x32xf32>,
    %c0_66 = arith.constant 0 : index
    %c0_67 = arith.constant 0 : index
    %106 = vector.load %arg13[%c0_66, %c0_67] : memref<2x32xf32, #tpu.memory_space<vmem>>, vector<2x32xf32>
    tpu.vector_store %arg13[%c0_66, %c0_67], %102 {strides = array<i32>} : memref<2x32xf32, #tpu.memory_space<vmem>>, vector<2x32xf32>,
    %c6_68 = arith.constant 6 : index
    %c0_69 = arith.constant 0 : index
    %107 = vector.load %arg10[%c6_68, %c0_69] : memref<16x32xf32, #tpu.memory_space<vmem>>, vector<2x32xf32>
    tpu.vector_store %arg10[%c6_68, %c0_69], %104 {strides = array<i32>} : memref<16x32xf32, #tpu.memory_space<vmem>>, vector<2x32xf32>,
    %c8 = arith.constant 8 : index
    %c0_70 = arith.constant 0 : index
    %108 = vector.load %arg11[%c8, %c0_70] : memref<16x128xf32, #tpu.memory_space<vmem>>, vector<2x128xf32>
    %c0_71 = arith.constant 0 : index
    %c0_72 = arith.constant 0 : index
    %109 = vector.load %arg12[%c0_71, %c0_72] : memref<2x32xf32, #tpu.memory_space<vmem>>, vector<2x32xf32>
    %cst_73 = arith.constant dense<0.000000e+00> : vector<2x128xf32>
    %110 = tpu.matmul %109, %7, %cst_73 {dimension_numbers = #tpu.dot_dimension_numbers<[1], [0], [0], [1], [0, 0, 1, 1], [], []>} : vector<2x32xf32>, vector<32x128xf32>, vector<2x128xf32> -> vector<2x128xf32>
    %111 = arith.addf %108, %110 : vector<2x128xf32>
    %112 = arith.negf %111 : vector<2x128xf32>
    %113 = math.exp %112 : vector<2x128xf32>
    %cst_74 = arith.constant 1.000000e+00 : f32
    %114 = vector.broadcast %cst_74 : f32 to vector<2x128xf32>
    %115 = arith.addf %114, %113 : vector<2x128xf32>
    %116 = arith.divf %114, %115 : vector<2x128xf32>
    %117 = math.tanh %111 : vector<2x128xf32>
    %118 = vector.extract_strided_slice %116 {offsets = [0, 0], sizes = [2, 32], strides = [1, 1]} : vector<2x128xf32> to vector<2x32xf32>
    %119 = vector.extract_strided_slice %116 {offsets = [0, 32], sizes = [2, 32], strides = [1, 1]} : vector<2x128xf32> to vector<2x32xf32>
    %120 = vector.extract_strided_slice %117 {offsets = [0, 64], sizes = [2, 32], strides = [1, 1]} : vector<2x128xf32> to vector<2x32xf32>
    %121 = vector.extract_strided_slice %116 {offsets = [0, 96], sizes = [2, 32], strides = [1, 1]} : vector<2x128xf32> to vector<2x32xf32>
    %c0_75 = arith.constant 0 : index
    %c0_76 = arith.constant 0 : index
    %122 = vector.load %arg13[%c0_75, %c0_76] : memref<2x32xf32, #tpu.memory_space<vmem>>, vector<2x32xf32>
    %123 = arith.mulf %119, %122 : vector<2x32xf32>
    %124 = arith.mulf %118, %120 : vector<2x32xf32>
    %125 = arith.addf %123, %124 : vector<2x32xf32>
    %126 = math.tanh %125 : vector<2x32xf32>
    %127 = arith.mulf %121, %126 : vector<2x32xf32>
    %c0_77 = arith.constant 0 : index
    %c0_78 = arith.constant 0 : index
    %128 = vector.load %arg12[%c0_77, %c0_78] : memref<2x32xf32, #tpu.memory_space<vmem>>, vector<2x32xf32>
    tpu.vector_store %arg12[%c0_77, %c0_78], %127 {strides = array<i32>} : memref<2x32xf32, #tpu.memory_space<vmem>>, vector<2x32xf32>,
    %c0_79 = arith.constant 0 : index
    %c0_80 = arith.constant 0 : index
    %129 = vector.load %arg13[%c0_79, %c0_80] : memref<2x32xf32, #tpu.memory_space<vmem>>, vector<2x32xf32>
    tpu.vector_store %arg13[%c0_79, %c0_80], %125 {strides = array<i32>} : memref<2x32xf32, #tpu.memory_space<vmem>>, vector<2x32xf32>,
    %c8_81 = arith.constant 8 : index
    %c0_82 = arith.constant 0 : index
    %130 = vector.load %arg10[%c8_81, %c0_82] : memref<16x32xf32, #tpu.memory_space<vmem>>, vector<2x32xf32>
    tpu.vector_store %arg10[%c8_81, %c0_82], %127 {strides = array<i32>} : memref<16x32xf32, #tpu.memory_space<vmem>>, vector<2x32xf32>,
    %c10 = arith.constant 10 : index
    %c0_83 = arith.constant 0 : index
    %131 = vector.load %arg11[%c10, %c0_83] : memref<16x128xf32, #tpu.memory_space<vmem>>, vector<2x128xf32>
    %c0_84 = arith.constant 0 : index
    %c0_85 = arith.constant 0 : index
    %132 = vector.load %arg12[%c0_84, %c0_85] : memref<2x32xf32, #tpu.memory_space<vmem>>, vector<2x32xf32>
    %cst_86 = arith.constant dense<0.000000e+00> : vector<2x128xf32>
    %133 = tpu.matmul %132, %7, %cst_86 {dimension_numbers = #tpu.dot_dimension_numbers<[1], [0], [0], [1], [0, 0, 1, 1], [], []>} : vector<2x32xf32>, vector<32x128xf32>, vector<2x128xf32> -> vector<2x128xf32>
    %134 = arith.addf %131, %133 : vector<2x128xf32>
    %135 = arith.negf %134 : vector<2x128xf32>
    %136 = math.exp %135 : vector<2x128xf32>
    %cst_87 = arith.constant 1.000000e+00 : f32
    %137 = vector.broadcast %cst_87 : f32 to vector<2x128xf32>
    %138 = arith.addf %137, %136 : vector<2x128xf32>
    %139 = arith.divf %137, %138 : vector<2x128xf32>
    %140 = math.tanh %134 : vector<2x128xf32>
    %141 = vector.extract_strided_slice %139 {offsets = [0, 0], sizes = [2, 32], strides = [1, 1]} : vector<2x128xf32> to vector<2x32xf32>
    %142 = vector.extract_strided_slice %139 {offsets = [0, 32], sizes = [2, 32], strides = [1, 1]} : vector<2x128xf32> to vector<2x32xf32>
    %143 = vector.extract_strided_slice %140 {offsets = [0, 64], sizes = [2, 32], strides = [1, 1]} : vector<2x128xf32> to vector<2x32xf32>
    %144 = vector.extract_strided_slice %139 {offsets = [0, 96], sizes = [2, 32], strides = [1, 1]} : vector<2x128xf32> to vector<2x32xf32>
    %c0_88 = arith.constant 0 : index
    %c0_89 = arith.constant 0 : index
    %145 = vector.load %arg13[%c0_88, %c0_89] : memref<2x32xf32, #tpu.memory_space<vmem>>, vector<2x32xf32>
    %146 = arith.mulf %142, %145 : vector<2x32xf32>
    %147 = arith.mulf %141, %143 : vector<2x32xf32>
    %148 = arith.addf %146, %147 : vector<2x32xf32>
    %149 = math.tanh %148 : vector<2x32xf32>
    %150 = arith.mulf %144, %149 : vector<2x32xf32>
    %c0_90 = arith.constant 0 : index
    %c0_91 = arith.constant 0 : index
    %151 = vector.load %arg12[%c0_90, %c0_91] : memref<2x32xf32, #tpu.memory_space<vmem>>, vector<2x32xf32>
    tpu.vector_store %arg12[%c0_90, %c0_91], %150 {strides = array<i32>} : memref<2x32xf32, #tpu.memory_space<vmem>>, vector<2x32xf32>,
    %c0_92 = arith.constant 0 : index
    %c0_93 = arith.constant 0 : index
    %152 = vector.load %arg13[%c0_92, %c0_93] : memref<2x32xf32, #tpu.memory_space<vmem>>, vector<2x32xf32>
    tpu.vector_store %arg13[%c0_92, %c0_93], %148 {strides = array<i32>} : memref<2x32xf32, #tpu.memory_space<vmem>>, vector<2x32xf32>,
    %c10_94 = arith.constant 10 : index
    %c0_95 = arith.constant 0 : index
    %153 = vector.load %arg10[%c10_94, %c0_95] : memref<16x32xf32, #tpu.memory_space<vmem>>, vector<2x32xf32>
    tpu.vector_store %arg10[%c10_94, %c0_95], %150 {strides = array<i32>} : memref<16x32xf32, #tpu.memory_space<vmem>>, vector<2x32xf32>,
    %c12 = arith.constant 12 : index
    %c0_96 = arith.constant 0 : index
    %154 = vector.load %arg11[%c12, %c0_96] : memref<16x128xf32, #tpu.memory_space<vmem>>, vector<2x128xf32>
    %c0_97 = arith.constant 0 : index
    %c0_98 = arith.constant 0 : index
    %155 = vector.load %arg12[%c0_97, %c0_98] : memref<2x32xf32, #tpu.memory_space<vmem>>, vector<2x32xf32>
    %cst_99 = arith.constant dense<0.000000e+00> : vector<2x128xf32>
    %156 = tpu.matmul %155, %7, %cst_99 {dimension_numbers = #tpu.dot_dimension_numbers<[1], [0], [0], [1], [0, 0, 1, 1], [], []>} : vector<2x32xf32>, vector<32x128xf32>, vector<2x128xf32> -> vector<2x128xf32>
    %157 = arith.addf %154, %156 : vector<2x128xf32>
    %158 = arith.negf %157 : vector<2x128xf32>
    %159 = math.exp %158 : vector<2x128xf32>
    %cst_100 = arith.constant 1.000000e+00 : f32
    %160 = vector.broadcast %cst_100 : f32 to vector<2x128xf32>
    %161 = arith.addf %160, %159 : vector<2x128xf32>
    %162 = arith.divf %160, %161 : vector<2x128xf32>
    %163 = math.tanh %157 : vector<2x128xf32>
    %164 = vector.extract_strided_slice %162 {offsets = [0, 0], sizes = [2, 32], strides = [1, 1]} : vector<2x128xf32> to vector<2x32xf32>
    %165 = vector.extract_strided_slice %162 {offsets = [0, 32], sizes = [2, 32], strides = [1, 1]} : vector<2x128xf32> to vector<2x32xf32>
    %166 = vector.extract_strided_slice %163 {offsets = [0, 64], sizes = [2, 32], strides = [1, 1]} : vector<2x128xf32> to vector<2x32xf32>
    %167 = vector.extract_strided_slice %162 {offsets = [0, 96], sizes = [2, 32], strides = [1, 1]} : vector<2x128xf32> to vector<2x32xf32>
    %c0_101 = arith.constant 0 : index
    %c0_102 = arith.constant 0 : index
    %168 = vector.load %arg13[%c0_101, %c0_102] : memref<2x32xf32, #tpu.memory_space<vmem>>, vector<2x32xf32>
    %169 = arith.mulf %165, %168 : vector<2x32xf32>
    %170 = arith.mulf %164, %166 : vector<2x32xf32>
    %171 = arith.addf %169, %170 : vector<2x32xf32>
    %172 = math.tanh %171 : vector<2x32xf32>
    %173 = arith.mulf %167, %172 : vector<2x32xf32>
    %c0_103 = arith.constant 0 : index
    %c0_104 = arith.constant 0 : index
    %174 = vector.load %arg12[%c0_103, %c0_104] : memref<2x32xf32, #tpu.memory_space<vmem>>, vector<2x32xf32>
    tpu.vector_store %arg12[%c0_103, %c0_104], %173 {strides = array<i32>} : memref<2x32xf32, #tpu.memory_space<vmem>>, vector<2x32xf32>,
    %c0_105 = arith.constant 0 : index
    %c0_106 = arith.constant 0 : index
    %175 = vector.load %arg13[%c0_105, %c0_106] : memref<2x32xf32, #tpu.memory_space<vmem>>, vector<2x32xf32>
    tpu.vector_store %arg13[%c0_105, %c0_106], %171 {strides = array<i32>} : memref<2x32xf32, #tpu.memory_space<vmem>>, vector<2x32xf32>,
    %c12_107 = arith.constant 12 : index
    %c0_108 = arith.constant 0 : index
    %176 = vector.load %arg10[%c12_107, %c0_108] : memref<16x32xf32, #tpu.memory_space<vmem>>, vector<2x32xf32>
    tpu.vector_store %arg10[%c12_107, %c0_108], %173 {strides = array<i32>} : memref<16x32xf32, #tpu.memory_space<vmem>>, vector<2x32xf32>,
    %c14 = arith.constant 14 : index
    %c0_109 = arith.constant 0 : index
    %177 = vector.load %arg11[%c14, %c0_109] : memref<16x128xf32, #tpu.memory_space<vmem>>, vector<2x128xf32>
    %c0_110 = arith.constant 0 : index
    %c0_111 = arith.constant 0 : index
    %178 = vector.load %arg12[%c0_110, %c0_111] : memref<2x32xf32, #tpu.memory_space<vmem>>, vector<2x32xf32>
    %cst_112 = arith.constant dense<0.000000e+00> : vector<2x128xf32>
    %179 = tpu.matmul %178, %7, %cst_112 {dimension_numbers = #tpu.dot_dimension_numbers<[1], [0], [0], [1], [0, 0, 1, 1], [], []>} : vector<2x32xf32>, vector<32x128xf32>, vector<2x128xf32> -> vector<2x128xf32>
    %180 = arith.addf %177, %179 : vector<2x128xf32>
    %181 = arith.negf %180 : vector<2x128xf32>
    %182 = math.exp %181 : vector<2x128xf32>
    %cst_113 = arith.constant 1.000000e+00 : f32
    %183 = vector.broadcast %cst_113 : f32 to vector<2x128xf32>
    %184 = arith.addf %183, %182 : vector<2x128xf32>
    %185 = arith.divf %183, %184 : vector<2x128xf32>
    %186 = math.tanh %180 : vector<2x128xf32>
    %187 = vector.extract_strided_slice %185 {offsets = [0, 0], sizes = [2, 32], strides = [1, 1]} : vector<2x128xf32> to vector<2x32xf32>
    %188 = vector.extract_strided_slice %185 {offsets = [0, 32], sizes = [2, 32], strides = [1, 1]} : vector<2x128xf32> to vector<2x32xf32>
    %189 = vector.extract_strided_slice %186 {offsets = [0, 64], sizes = [2, 32], strides = [1, 1]} : vector<2x128xf32> to vector<2x32xf32>
    %190 = vector.extract_strided_slice %185 {offsets = [0, 96], sizes = [2, 32], strides = [1, 1]} : vector<2x128xf32> to vector<2x32xf32>
    %c0_114 = arith.constant 0 : index
    %c0_115 = arith.constant 0 : index
    %191 = vector.load %arg13[%c0_114, %c0_115] : memref<2x32xf32, #tpu.memory_space<vmem>>, vector<2x32xf32>
    %192 = arith.mulf %188, %191 : vector<2x32xf32>
    %193 = arith.mulf %187, %189 : vector<2x32xf32>
    %194 = arith.addf %192, %193 : vector<2x32xf32>
    %195 = math.tanh %194 : vector<2x32xf32>
    %196 = arith.mulf %190, %195 : vector<2x32xf32>
    %c0_116 = arith.constant 0 : index
    %c0_117 = arith.constant 0 : index
    %197 = vector.load %arg12[%c0_116, %c0_117] : memref<2x32xf32, #tpu.memory_space<vmem>>, vector<2x32xf32>
    tpu.vector_store %arg12[%c0_116, %c0_117], %196 {strides = array<i32>} : memref<2x32xf32, #tpu.memory_space<vmem>>, vector<2x32xf32>,
    %c0_118 = arith.constant 0 : index
    %c0_119 = arith.constant 0 : index
    %198 = vector.load %arg13[%c0_118, %c0_119] : memref<2x32xf32, #tpu.memory_space<vmem>>, vector<2x32xf32>
    tpu.vector_store %arg13[%c0_118, %c0_119], %194 {strides = array<i32>} : memref<2x32xf32, #tpu.memory_space<vmem>>, vector<2x32xf32>,
    %c14_120 = arith.constant 14 : index
    %c0_121 = arith.constant 0 : index
    %199 = vector.load %arg10[%c14_120, %c0_121] : memref<16x32xf32, #tpu.memory_space<vmem>>, vector<2x32xf32>
    tpu.vector_store %arg10[%c14_120, %c0_121], %196 {strides = array<i32>} : memref<16x32xf32, #tpu.memory_space<vmem>>, vector<2x32xf32>,
    %c0_122 = arith.constant 0 : index
    %c0_123 = arith.constant 0 : index
    %200 = vector.load %arg12[%c0_122, %c0_123] : memref<2x32xf32, #tpu.memory_space<vmem>>, vector<2x32xf32>
    %c0_124 = arith.constant 0 : index
    %c0_125 = arith.constant 0 : index
    %c0_126 = arith.constant 0 : index
    %201 = vector.load %arg8[%c0_124, %c0_125, %c0_126] : memref<1x2x32xf32, #tpu.memory_space<vmem>>, vector<1x2x32xf32>
    %202 = vector.shape_cast %201 : vector<1x2x32xf32> to vector<2x32xf32>
    %203 = vector.shape_cast %200 : vector<2x32xf32> to vector<1x2x32xf32>
    tpu.vector_store %arg8[%c0_124, %c0_125, %c0_126], %203 {strides = array<i32>} : memref<1x2x32xf32, #tpu.memory_space<vmem>>, vector<1x2x32xf32>,
    %c0_127 = arith.constant 0 : index
    %c0_128 = arith.constant 0 : index
    %204 = vector.load %arg13[%c0_127, %c0_128] : memref<2x32xf32, #tpu.memory_space<vmem>>, vector<2x32xf32>
    %c0_129 = arith.constant 0 : index
    %c0_130 = arith.constant 0 : index
    %c0_131 = arith.constant 0 : index
    %205 = vector.load %arg9[%c0_129, %c0_130, %c0_131] : memref<1x2x32xf32, #tpu.memory_space<vmem>>, vector<1x2x32xf32>
    %206 = vector.shape_cast %205 : vector<1x2x32xf32> to vector<2x32xf32>
    %207 = vector.shape_cast %204 : vector<2x32xf32> to vector<1x2x32xf32>
    tpu.vector_store %arg9[%c0_129, %c0_130, %c0_131], %207 {strides = array<i32>} : memref<1x2x32xf32, #tpu.memory_space<vmem>>, vector<1x2x32xf32>,
    return
  }
  func.func @transform_0(%arg0: i32) -> (i32, i32) {
    %c0_i32 = arith.constant 0 : i32
    %c0_i32_0 = arith.constant 0 : i32
    %c0_i32_1 = arith.constant 0 : i32
    return %c0_i32, %c0_i32_0 : i32, i32
  }
  func.func @transform_1(%arg0: i32) -> (i32, i32, i32) {
    %c0_i32 = arith.constant 0 : i32
    %c0_i32_0 = arith.constant 0 : i32
    %c0_i32_1 = arith.constant 0 : i32
    return %arg0, %c0_i32, %c0_i32_0 : i32, i32, i32
  }
  func.func @transform_2(%arg0: i32) -> (i32, i32, i32) {
    %c0_i32 = arith.constant 0 : i32
    %c0_i32_0 = arith.constant 0 : i32
    %c0_i32_1 = arith.constant 0 : i32
    return %arg0, %c0_i32, %c0_i32_0 : i32, i32, i32
  }
  func.func @transform_3(%arg0: i32) -> (i32, i32) {
    %c0_i32 = arith.constant 0 : i32
    %c0_i32_0 = arith.constant 0 : i32
    %c0_i32_1 = arith.constant 0 : i32
    return %c0_i32, %c0_i32_0 : i32, i32
  }
  func.func @transform_4(%arg0: i32) -> (i32, i32, i32) {
    %c0_i32 = arith.constant 0 : i32
    %c0_i32_0 = arith.constant 0 : i32
    %c0_i32_1 = arith.constant 0 : i32
    return %arg0, %c0_i32, %c0_i32_0 : i32, i32, i32
  }
  func.func @transform_5(%arg0: i32) -> (i32, i32, i32) {
    %c0_i32 = arith.constant 0 : i32
    %c0_i32_0 = arith.constant 0 : i32
    %c0_i32_1 = arith.constant 0 : i32
    return %arg0, %c0_i32, %c0_i32_0 : i32, i32, i32
  }
  func.func @transform_6(%arg0: i32) -> (i32, i32, i32) {
    %c0_i32 = arith.constant 0 : i32
    %c0_i32_0 = arith.constant 0 : i32
    %c0_i32_1 = arith.constant 0 : i32
    return %arg0, %c0_i32, %c0_i32_0 : i32, i32, i32
  }
  func.func @transform_7(%arg0: i32) -> (i32, i32, i32) {
    %c0_i32 = arith.constant 0 : i32
    %c0_i32_0 = arith.constant 0 : i32
    %c0_i32_1 = arith.constant 0 : i32
    return %arg0, %c0_i32, %c0_i32_0 : i32, i32, i32
  }
  func.func @transform_8(%arg0: i32) -> (i32, i32, i32) {
    %c0_i32 = arith.constant 0 : i32
    %c0_i32_0 = arith.constant 0 : i32
    %c0_i32_1 = arith.constant 0 : i32
    return %arg0, %c0_i32, %c0_i32_0 : i32, i32, i32
  }
}

</mosaic_0001>

<llo_original>
// kernel: tpu_custom_call.1
$region0: #{tpu_custom_call.1}
  #allocation0 [shape = 'u32[]', space=smem, size = 0x4, offset = 0x4, fixed_abs, tag = 'smem constant byte address 0x4 - core index']
  #allocation1 [shape = 'u32[72,128]{1,0:T(1,128)}', space=vmem, size = 0x9000, scoped, tag = 'internal scratch']
  #allocation2 [shape = 'f32[16,32]{1,0:T(8,128)}', space=vmem, size = 0x2000, scoped, tag = 'scratch operand']
  #allocation3 [shape = 'f32[16,128]{1,0:T(8,128)}', space=vmem, size = 0x2000, scoped, tag = 'scratch operand']
  #allocation4 [shape = 'f32[2,32]{1,0:T(2,128)}', space=vmem, size = 0x400, scoped, tag = 'scratch operand']
  #allocation5 [shape = 'f32[2,32]{1,0:T(2,128)}', space=vmem, size = 0x400, scoped, tag = 'scratch operand']
  %s0 = inlined_call_operand.hbm [shape: f32[16,32], index: 0, kind: input, shape index: {}]
  %s1 = inlined_call_operand.hbm [shape: f32[2,2,32], index: 1, kind: input, shape index: {}]
  %s2 = inlined_call_operand.hbm [shape: f32[2,2,32], index: 2, kind: input, shape index: {}]
  %s3 = inlined_call_operand.hbm [shape: f32[32,128], index: 3, kind: input, shape index: {}]
  %s4 = inlined_call_operand.hbm [shape: f32[2,32,128], index: 4, kind: input, shape index: {}]
  %s5 = inlined_call_operand.hbm [shape: f32[2,32,128], index: 5, kind: input, shape index: {}]
  %s6 = inlined_call_operand.vmem [shape: f32[2,1,128], index: 6, kind: input, shape index: {}]
  %s7 = inlined_call_operand.hbm [shape: f32[2,2,32], index: 7, kind: output, shape index: {0}]
  %s8 = inlined_call_operand.hbm [shape: f32[2,2,32], index: 8, kind: output, shape index: {1}]
  %9 = xla_tuple %s7, %s8
  %s10 = sld [smem:[#allocation0]]
  $region101: #{tpu_custom_call.1} parent=0
    _
  %s12 = ssub.s32 1, %s10
  %s13 = scalar_select 0, %s12, %s10
  $region1: #{tpu_custom_call.1} parent=0
    #allocation6 [shape = 'u8[8192]{0}', space=vmem, size = 0x2000, scoped, tag = 'input window, operand 0, single buffered']
    #allocation7 [shape = 's32[2]{0}', space=sflag, size = 0x8, scoped, tag = 'scoped memory for tpu_custom_call.1']
    #allocation8 [shape = 's32[2]{0}', space=sflag, size = 0x8, scoped, tag = 'scoped memory for tpu_custom_call.1']
    #allocation9 [shape = 'u8[2048]{0}', space=vmem, size = 0x800, scoped, tag = 'input window, operand 1']
    #allocation10 [shape = 's32[2]{0}', space=sflag, size = 0x8, scoped, tag = 'scoped memory for tpu_custom_call.1']
    #allocation11 [shape = 'u8[2048]{0}', space=vmem, size = 0x800, scoped, tag = 'input window, operand 2']
    #allocation12 [shape = 'u8[16384]{0}', space=vmem, size = 0x4000, scoped, tag = 'input window, operand 3, single buffered']
    #allocation13 [shape = 's32[1]{0}', space=sflag, size = 0x4, scoped, tag = 'scoped memory for tpu_custom_call.1']
    #allocation14 [shape = 'u8[32768]{0}', space=vmem, size = 0x8000, scoped, tag = 'input window, operand 4']
    #allocation15 [shape = 'u8[32768]{0}', space=vmem, size = 0x8000, scoped, tag = 'input window, operand 5']
    #allocation16 [shape = 'u8[2048]{0}', space=vmem, size = 0x800, scoped, tag = 'output window, operand 0']
    #allocation17 [shape = 'u8[2048]{0}', space=vmem, size = 0x800, scoped, tag = 'output window, operand 1']
    #allocation18 [shape = 's32[2]{0}', space=sflag, size = 0x8, scoped, tag = 'scoped memory for tpu_custom_call.1']
    %14 = vsyncpa [#allocation7], 0
    %15 = vsyncpa [#allocation10], 0
    %s16 = scalar_lea.sflag [#allocation10], 1
    %17 = vsyncpa %s16, 0
    %18 = vsyncpa [#allocation13], 0
    %19 = vsyncpa [#allocation8], 0
    %s20 = scalar_lea.sflag [#allocation8], 1
    %21 = vsyncpa %s20, 0
    %22 = vsyncpa [#allocation18], 0
    %s23 = scalar_lea.sflag [#allocation18], 1
    %24 = vsyncpa %s23, 0
    loop: start=0, step=1, limit=4
    $region2: #{tpu_custom_call.1} parent=1 // loop_pre_header
      _
    $region3: #{tpu_custom_call.1} parent=1 // loop_header
      %s26 = sphi 0, %s30
      %p27 = scmp.ge.s32.totalorder %s26, 4
      %s34 = sphi 0, %s34
      %s36 = sphi 0, %s34
      %s37 = sphi 0, %s36
      %s51 = sphi 0, %s37
      %s57 = sphi 0, %s59
      %s60 = sphi 0, %s57
      %s61 = sphi 0, %s60
      %s77 = sphi 0, %s61
      %s83 = sphi 0, %s85
      %s86 = sphi 0, %s83
      %s87 = sphi 0, %s86
      %s103 = sphi 0, %s87
      %s107 = sphi 0, %s107
      %s109 = sphi 0, %s107
      %s110 = sphi 0, %s109
      %s124 = sphi 0, %s110
      %s130 = sphi 0, %s132
      %s133 = sphi 0, %s130
      %s134 = sphi 0, %s133
      %s150 = sphi 0, %s134
      %s156 = sphi 0, %s158
      %s159 = sphi 0, %s156
      %s160 = sphi 0, %s159
      %s176 = sphi 0, %s160
      %s182 = sphi 0, %s184
      %s185 = sphi 0, %s182
      %s186 = sphi 0, %s185
      %s202 = sphi 0, %s186
      %s208 = sphi 0, %s210
      %s211 = sphi 0, %s208
      %s212 = sphi 0, %s211
      %s228 = sphi 0, %s212
      %s234 = sphi 0, %s236
      %s237 = sphi 0, %s234
      %s238 = sphi 0, %s237
      %s254 = sphi 0, %s238
    $region4: #{tpu_custom_call.1} parent=1 // loop_header_branch
      %29 = sbr.rel (%p27) target = $region8
    $region5: #{tpu_custom_call.1} parent=1 // loop_body
      %s31 = ssub.s32 %s26, 1
      %s32 = ssub.s32 %s26, 2
      %s33 = sadd.s32 %s26, 1
      %s35 = sadd.s32 %s34, 1
      %p38 = scmp.eq.s32.totalorder %s26, 1
      %p39 = scmp.ne.s32.totalorder %s34, %s36
      %p40 = scmp.eq.s32.totalorder %s26, 0
      %p41 = por %p39, %p40
      %p42 = scmp.ne.s32.totalorder %s34, %s36
      %p43 = scmp.eq.s32.totalorder %s31, 1
      %p44 = por %p42, %p43
      %p45 = scmp.ne.s32.totalorder %s36, %s37
      %p46 = scmp.eq.s32.totalorder %s31, 0
      %p47 = por %p45, %p46
      %p48 = scmp.ne.s32.totalorder %s36, %s37
      %p49 = scmp.eq.s32.totalorder %s32, 1
      %p50 = por %p48, %p49
      %p52 = scmp.ne.s32.totalorder %s37, %s51
      %p53 = scmp.eq.s32.totalorder %s32, 0
      %p54 = por %p52, %p53
      %s55 = ssub.s32 %s26, %s33
      %p56 = scmp.eq.s32.totalorder %s55, 0
      %s58 = sadd.s32 %s57, 1
      %s59 = scalar_select %p56, %s57, %s58
      %p62 = pneg %p56
      %p63 = scmp.eq.s32.totalorder %s26, 1
      %p64 = por %p62, %p63
      %p65 = scmp.ne.s32.totalorder %s57, %s60
      %p66 = scmp.eq.s32.totalorder %s26, 0
      %p67 = por %p65, %p66
      %p68 = scmp.ne.s32.totalorder %s57, %s60
      %p69 = scmp.eq.s32.totalorder %s31, 1
      %p70 = por %p68, %p69
      %p71 = scmp.ne.s32.totalorder %s60, %s61
      %p72 = scmp.eq.s32.totalorder %s31, 0
      %p73 = por %p71, %p72
      %p74 = scmp.ne.s32.totalorder %s60, %s61
      %p75 = scmp.eq.s32.totalorder %s32, 1
      %p76 = por %p74, %p75
      %p78 = scmp.ne.s32.totalorder %s61, %s77
      %p79 = scmp.eq.s32.totalorder %s32, 0
      %p80 = por %p78, %p79
      %s81 = ssub.s32 %s26, %s33
      %p82 = scmp.eq.s32.totalorder %s81, 0
      %s84 = sadd.s32 %s83, 1
      %s85 = scalar_select %p82, %s83, %s84
      %p88 = pneg %p82
      %p89 = scmp.eq.s32.totalorder %s26, 1
      %p90 = por %p88, %p89
      %p91 = scmp.ne.s32.totalorder %s83, %s86
      %p92 = scmp.eq.s32.totalorder %s26, 0
      %p93 = por %p91, %p92
      %p94 = scmp.ne.s32.totalorder %s83, %s86
      %p95 = scmp.eq.s32.totalorder %s31, 1
      %p96 = por %p94, %p95
      %p97 = scmp.ne.s32.totalorder %s86, %s87
      %p98 = scmp.eq.s32.totalorder %s31, 0
      %p99 = por %p97, %p98
      %p100 = scmp.ne.s32.totalorder %s86, %s87
      %p101 = scmp.eq.s32.totalorder %s32, 1
      %p102 = por %p100, %p101
      %p104 = scmp.ne.s32.totalorder %s87, %s103
      %p105 = scmp.eq.s32.totalorder %s32, 0
      %p106 = por %p104, %p105
      %s108 = sadd.s32 %s107, 1
      %p111 = scmp.eq.s32.totalorder %s26, 1
      %p112 = scmp.ne.s32.totalorder %s107, %s109
      %p113 = scmp.eq.s32.totalorder %s26, 0
      %p114 = por %p112, %p113
      %p115 = scmp.ne.s32.totalorder %s107, %s109
      %p116 = scmp.eq.s32.totalorder %s31, 1
      %p117 = por %p115, %p116
      %p118 = scmp.ne.s32.totalorder %s109, %s110
      %p119 = scmp.eq.s32.totalorder %s31, 0
      %p120 = por %p118, %p119
      %p121 = scmp.ne.s32.totalorder %s109, %s110
      %p122 = scmp.eq.s32.totalorder %s32, 1
      %p123 = por %p121, %p122
      %p125 = scmp.ne.s32.totalorder %s110, %s124
      %p126 = scmp.eq.s32.totalorder %s32, 0
      %p127 = por %p125, %p126
      %s128 = ssub.s32 %s26, %s33
      %p129 = scmp.eq.s32.totalorder %s128, 0
      %s131 = sadd.s32 %s130, 1
      %s132 = scalar_select %p129, %s130, %s131
      %p135 = pneg %p129
      %p136 = scmp.eq.s32.totalorder %s26, 1
      %p137 = por %p135, %p136
      %p138 = scmp.ne.s32.totalorder %s130, %s133
      %p139 = scmp.eq.s32.totalorder %s26, 0
      %p140 = por %p138, %p139
      %p141 = scmp.ne.s32.totalorder %s130, %s133
      %p142 = scmp.eq.s32.totalorder %s31, 1
      %p143 = por %p141, %p142
      %p144 = scmp.ne.s32.totalorder %s133, %s134
      %p145 = scmp.eq.s32.totalorder %s31, 0
      %p146 = por %p144, %p145
      %p147 = scmp.ne.s32.totalorder %s133, %s134
      %p148 = scmp.eq.s32.totalorder %s32, 1
      %p149 = por %p147, %p148
      %p151 = scmp.ne.s32.totalorder %s134, %s150
      %p152 = scmp.eq.s32.totalorder %s32, 0
      %p153 = por %p151, %p152
      %s154 = ssub.s32 %s26, %s33
      %p155 = scmp.eq.s32.totalorder %s154, 0
      %s157 = sadd.s32 %s156, 1
      %s158 = scalar_select %p155, %s156, %s157
      %p161 = pneg %p155
      %p162 = scmp.eq.s32.totalorder %s26, 1
      %p163 = por %p161, %p162
      %p164 = scmp.ne.s32.totalorder %s156, %s159
      %p165 = scmp.eq.s32.totalorder %s26, 0
      %p166 = por %p164, %p165
      %p167 = scmp.ne.s32.totalorder %s156, %s159
      %p168 = scmp.eq.s32.totalorder %s31, 1
      %p169 = por %p167, %p168
      %p170 = scmp.ne.s32.totalorder %s159, %s160
      %p171 = scmp.eq.s32.totalorder %s31, 0
      %p172 = por %p170, %p171
      %p173 = scmp.ne.s32.totalorder %s159, %s160
      %p174 = scmp.eq.s32.totalorder %s32, 1
      %p175 = por %p173, %p174
      %p177 = scmp.ne.s32.totalorder %s160, %s176
      %p178 = scmp.eq.s32.totalorder %s32, 0
      %p179 = por %p177, %p178
      %s180 = ssub.s32 %s26, %s33
      %p181 = scmp.eq.s32.totalorder %s180, 0
      %s183 = sadd.s32 %s182, 1
      %s184 = scalar_select %p181, %s182, %s183
      %p187 = pneg %p181
      %p188 = scmp.eq.s32.totalorder %s26, 1
      %p189 = por %p187, %p188
      %p190 = scmp.ne.s32.totalorder %s182, %s185
      %p191 = scmp.eq.s32.totalorder %s26, 0
      %p192 = por %p190, %p191
      %p193 = scmp.ne.s32.totalorder %s182, %s185
      %p194 = scmp.eq.s32.totalorder %s31, 1
      %p195 = por %p193, %p194
      %p196 = scmp.ne.s32.totalorder %s185, %s186
      %p197 = scmp.eq.s32.totalorder %s31, 0
      %p198 = por %p196, %p197
      %p199 = scmp.ne.s32.totalorder %s185, %s186
      %p200 = scmp.eq.s32.totalorder %s32, 1
      %p201 = por %p199, %p200
      %p203 = scmp.ne.s32.totalorder %s186, %s202
      %p204 = scmp.eq.s32.totalorder %s32, 0
      %p205 = por %p203, %p204
      %s206 = ssub.s32 %s26, %s33
      %p207 = scmp.eq.s32.totalorder %s206, 0
      %s209 = sadd.s32 %s208, 1
      %s210 = scalar_select %p207, %s208, %s209
      %p213 = pneg %p207
      %p214 = scmp.eq.s32.totalorder %s26, 1
      %p215 = por %p213, %p214
      %p216 = scmp.ne.s32.totalorder %s208, %s211
      %p217 = scmp.eq.s32.totalorder %s26, 0
      %p218 = por %p216, %p217
      %p219 = scmp.ne.s32.totalorder %s208, %s211
      %p220 = scmp.eq.s32.totalorder %s31, 1
      %p221 = por %p219, %p220
      %p222 = scmp.ne.s32.totalorder %s211, %s212
      %p223 = scmp.eq.s32.totalorder %s31, 0
      %p224 = por %p222, %p223
      %p225 = scmp.ne.s32.totalorder %s211, %s212
      %p226 = scmp.eq.s32.totalorder %s32, 1
      %p227 = por %p225, %p226
      %p229 = scmp.ne.s32.totalorder %s212, %s228
      %p230 = scmp.eq.s32.totalorder %s32, 0
      %p231 = por %p229, %p230
      %s232 = ssub.s32 %s26, %s33
      %p233 = scmp.eq.s32.totalorder %s232, 0
      %s235 = sadd.s32 %s234, 1
      %s236 = scalar_select %p233, %s234, %s235
      %p239 = pneg %p233
      %p240 = scmp.eq.s32.totalorder %s26, 1
      %p241 = por %p239, %p240
      %p242 = scmp.ne.s32.totalorder %s234, %s237
      %p243 = scmp.eq.s32.totalorder %s26, 0
      %p244 = por %p242, %p243
      %p245 = scmp.ne.s32.totalorder %s234, %s237
      %p246 = scmp.eq.s32.totalorder %s31, 1
      %p247 = por %p245, %p246
      %p248 = scmp.ne.s32.totalorder %s237, %s238
      %p249 = scmp.eq.s32.totalorder %s31, 0
      %p250 = por %p248, %p249
      %p251 = scmp.ne.s32.totalorder %s237, %s238
      %p252 = scmp.eq.s32.totalorder %s32, 1
      %p253 = por %p251, %p252
      %p255 = scmp.ne.s32.totalorder %s238, %s254
      %p256 = scmp.eq.s32.totalorder %s32, 0
      %p257 = por %p255, %p256
      %p258 = scmp.le.s32.totalorder 1, %s26
      %p259 = scmp.lt.s32.totalorder %s26, 3
      %p260 = pnand %p258, %p259
      %p261 = pneg %p260
      // Predicated region
      $region9: #{tpu_custom_call.1} parent=5 // pred_check
        _
      $region10: #{tpu_custom_call.1} parent=5 // pred_check_branch
        %263 = sbr.rel (%p260) target = $region12
      $region11: #{tpu_custom_call.1} parent=5 // pred_region
        %s264 = ssub.s32 %s26, 1
        // Predicated region
        $region13: #{tpu_custom_call.1} parent=11 // pred_check
          %p265 = pneg %p47
        $region14: #{tpu_custom_call.1} parent=11 // pred_check_branch
          %267 = sbr.rel (%p265) target = $region16
        $region15: #{tpu_custom_call.1} parent=11 // pred_region
          %269 = vsyncadd [#allocation7], 0
          %s270 = sshll.u32 %s0, 4
          %s271 = int_to_ptr.hbm [resolvable:$true] %s270
          %s272 = sshll.u32 [#allocation6], 4
          %s273 = int_to_ptr.vmem [resolvable:$true] %s272
          %278 = dma.hbm_to_vmem [thread:$0]  %s271, 256, %s273, [#allocation7], 128, 128, 8
        $region16: #{tpu_custom_call.1} parent=11 // pred_fallthru
          _
        // Predicated region
        $region17: #{tpu_custom_call.1} parent=11 // pred_check
          %p279 = pneg %p120
        $region18: #{tpu_custom_call.1} parent=11 // pred_check_branch
          %281 = sbr.rel (%p279) target = $region20
        $region19: #{tpu_custom_call.1} parent=11 // pred_region
          %283 = vsyncadd [#allocation13], 0
          %s284 = sshll.u32 %s3, 4
          %s285 = int_to_ptr.hbm [resolvable:$true] %s284
          %s286 = sshll.u32 [#allocation12], 4
          %s287 = int_to_ptr.vmem [resolvable:$true] %s286
          %292 = dma.hbm_to_vmem [thread:$0]  %s285, 512, %s287, [#allocation13], 128, 128, 8
        $region20: #{tpu_custom_call.1} parent=11 // pred_fallthru
          _
      $region12: #{tpu_custom_call.1} parent=5 // pred_fallthru
        _
      %p293 = scmp.lt.s32.totalorder %s26, 2
      // Predicated region
      $region21: #{tpu_custom_call.1} parent=5 // pred_check
        %p294 = pneg %p293
      $region22: #{tpu_custom_call.1} parent=5 // pred_check_branch
        %296 = sbr.rel (%p294) target = $region24
      $region23: #{tpu_custom_call.1} parent=5 // pred_region
        // Predicated region
        $region25: #{tpu_custom_call.1} parent=23 // pred_check
          %p297 = pneg %p67
        $region26: #{tpu_custom_call.1} parent=23 // pred_check_branch
          %299 = sbr.rel (%p297) target = $region28
        $region27: #{tpu_custom_call.1} parent=23 // pred_region
          %s300 = sand.u32 %s26, 1
          %s301 = scalar_lea.sflag [#allocation10], %s300
          %s302 = sand.u32 %s57, 1
          %s303 = smul.addr %s302, 2
          %s304 = scalar_lea.vmem [#allocation9], %s303
          %306 = vsyncadd %s301, 0
          %s307 = smul.addr %s26, 2
          %s308 = scalar_lea.hbm %s1, %s307
          %s310 = sshll.u32 %s308, 4
          %s311 = int_to_ptr.hbm [resolvable:$true] %s310
          %s312 = sshll.u32 %s304, 4
          %s313 = int_to_ptr.vmem [resolvable:$true] %s312
          %315 = dma.hbm_to_vmem [thread:$0]  %s311, 32, %s313, %s301
        $region28: #{tpu_custom_call.1} parent=23 // pred_fallthru
          _
        // Predicated region
        $region29: #{tpu_custom_call.1} parent=23 // pred_check
          %p316 = pneg %p93
        $region30: #{tpu_custom_call.1} parent=23 // pred_check_branch
          %318 = sbr.rel (%p316) target = $region32
        $region31: #{tpu_custom_call.1} parent=23 // pred_region
          %s319 = sand.u32 %s26, 1
          %s320 = scalar_lea.sflag [#allocation10], %s319
          %s321 = sand.u32 %s83, 1
          %s322 = smul.addr %s321, 2
          %s323 = scalar_lea.vmem [#allocation11], %s322
          %325 = vsyncadd %s320, 0
          %s326 = smul.addr %s26, 2
          %s327 = scalar_lea.hbm %s2, %s326
          %s329 = sshll.u32 %s327, 4
          %s330 = int_to_ptr.hbm [resolvable:$true] %s329
          %s331 = sshll.u32 %s323, 4
          %s332 = int_to_ptr.vmem [resolvable:$true] %s331
          %334 = dma.hbm_to_vmem [thread:$0]  %s330, 32, %s332, %s320
        $region32: #{tpu_custom_call.1} parent=23 // pred_fallthru
          _
        // Predicated region
        $region33: #{tpu_custom_call.1} parent=23 // pred_check
          %p335 = pneg %p140
        $region34: #{tpu_custom_call.1} parent=23 // pred_check_branch
          %337 = sbr.rel (%p335) target = $region36
        $region35: #{tpu_custom_call.1} parent=23 // pred_region
          %s338 = sand.u32 %s26, 1
          %s339 = scalar_lea.sflag [#allocation7], %s338
          %s340 = sand.u32 %s130, 1
          %s341 = smul.addr %s340, 32
          %s342 = scalar_lea.vmem [#allocation14], %s341
          %344 = vsyncadd %s339, 0
          %s345 = smul.addr %s26, 4
          %s346 = smul.addr %s345, 8
          %s347 = scalar_lea.hbm %s4, %s346
          %s348 = sshll.u32 %s347, 4
          %s349 = int_to_ptr.hbm [resolvable:$true] %s348
          %s350 = sshll.u32 %s342, 4
          %s351 = int_to_ptr.vmem [resolvable:$true] %s350
          %356 = dma.hbm_to_vmem [thread:$0]  %s349, 512, %s351, %s339, 128, 128, 8
        $region36: #{tpu_custom_call.1} parent=23 // pred_fallthru
          _
        // Predicated region
        $region37: #{tpu_custom_call.1} parent=23 // pred_check
          %p357 = pneg %p166
        $region38: #{tpu_custom_call.1} parent=23 // pred_check_branch
          %359 = sbr.rel (%p357) target = $region40
        $region39: #{tpu_custom_call.1} parent=23 // pred_region
          %s360 = sand.u32 %s26, 1
          %s361 = scalar_lea.sflag [#allocation10], %s360
          %s362 = sand.u32 %s156, 1
          %s363 = smul.addr %s362, 32
          %s364 = scalar_lea.vmem [#allocation15], %s363
          %366 = vsyncadd %s361, 0
          %s367 = smul.addr %s26, 4
          %s368 = smul.addr %s367, 8
          %s369 = scalar_lea.hbm %s5, %s368
          %s370 = sshll.u32 %s369, 4
          %s371 = int_to_ptr.hbm [resolvable:$true] %s370
          %s372 = sshll.u32 %s364, 4
          %s373 = int_to_ptr.vmem [resolvable:$true] %s372
          %378 = dma.hbm_to_vmem [thread:$0]  %s371, 512, %s373, %s361, 128, 128, 8
        $region40: #{tpu_custom_call.1} parent=23 // pred_fallthru
          _
        // Predicated region
        $region41: #{tpu_custom_call.1} parent=23 // pred_check
          %p379 = pneg %p192
        $region42: #{tpu_custom_call.1} parent=23 // pred_check_branch
          %381 = sbr.rel (%p379) target = $region44
        $region43: #{tpu_custom_call.1} parent=23 // pred_region
          %p382 = scmp.lt.s32.totalorder %s26, 1
          %s383 = scalar_select %p382, %s26, 1
          %s384 = scalar_lea.vmem %s6, %s383
        $region44: #{tpu_custom_call.1} parent=23 // pred_fallthru
          _
      $region24: #{tpu_custom_call.1} parent=5 // pred_fallthru
        _
      %p385 = scmp.le.s32.totalorder 1, %s26
      %p386 = scmp.lt.s32.totalorder %s26, 3
      %p387 = pnand %p385, %p386
      %p388 = pneg %p387
      // Predicated region
      $region45: #{tpu_custom_call.1} parent=5 // pred_check
        _
      $region46: #{tpu_custom_call.1} parent=5 // pred_check_branch
        %390 = sbr.rel (%p387) target = $region48
      $region47: #{tpu_custom_call.1} parent=5 // pred_region
        %s391 = ssub.s32 %s26, 1
        // Predicated region
        $region49: #{tpu_custom_call.1} parent=47 // pred_check
          %p392 = pneg %p47
        $region50: #{tpu_custom_call.1} parent=47 // pred_check_branch
          %394 = sbr.rel (%p392) target = $region52
        $region51: #{tpu_custom_call.1} parent=47 // pred_region
          %396 = dma.done [#allocation7], 256
        $region52: #{tpu_custom_call.1} parent=47 // pred_fallthru
          _
        %s397 = sand.u32 %s31, 1
        %s398 = scalar_lea.sflag [#allocation10], %s397
        %s399 = sand.u32 %s60, 1
        %s400 = smul.addr %s399, 2
        %s401 = scalar_lea.vmem [#allocation9], %s400
        // Predicated region
        $region53: #{tpu_custom_call.1} parent=47 // pred_check
          %p402 = pneg %p73
        $region54: #{tpu_custom_call.1} parent=47 // pred_check_branch
          %404 = sbr.rel (%p402) target = $region56
        $region55: #{tpu_custom_call.1} parent=47 // pred_region
          %406 = dma.done %s398, 32
        $region56: #{tpu_custom_call.1} parent=47 // pred_fallthru
          _
        %s407 = sand.u32 %s31, 1
        %s408 = scalar_lea.sflag [#allocation10], %s407
        %s409 = sand.u32 %s86, 1
        %s410 = smul.addr %s409, 2
        %s411 = scalar_lea.vmem [#allocation11], %s410
        // Predicated region
        $region57: #{tpu_custom_call.1} parent=47 // pred_check
          %p412 = pneg %p99
        $region58: #{tpu_custom_call.1} parent=47 // pred_check_branch
          %414 = sbr.rel (%p412) target = $region60
        $region59: #{tpu_custom_call.1} parent=47 // pred_region
          %416 = dma.done %s408, 32
        $region60: #{tpu_custom_call.1} parent=47 // pred_fallthru
          _
        // Predicated region
        $region61: #{tpu_custom_call.1} parent=47 // pred_check
          %p417 = pneg %p120
        $region62: #{tpu_custom_call.1} parent=47 // pred_check_branch
          %419 = sbr.rel (%p417) target = $region64
        $region63: #{tpu_custom_call.1} parent=47 // pred_region
          %421 = dma.done [#allocation13], 512
        $region64: #{tpu_custom_call.1} parent=47 // pred_fallthru
          _
        %s422 = sand.u32 %s31, 1
        %s423 = scalar_lea.sflag [#allocation7], %s422
        %s424 = sand.u32 %s133, 1
        %s425 = smul.addr %s424, 32
        %s426 = scalar_lea.vmem [#allocation14], %s425
        // Predicated region
        $region65: #{tpu_custom_call.1} parent=47 // pred_check
          %p427 = pneg %p146
        $region66: #{tpu_custom_call.1} parent=47 // pred_check_branch
          %429 = sbr.rel (%p427) target = $region68
        $region67: #{tpu_custom_call.1} parent=47 // pred_region
          %431 = dma.done %s423, 512
        $region68: #{tpu_custom_call.1} parent=47 // pred_fallthru
          _
        %s432 = sand.u32 %s31, 1
        %s433 = scalar_lea.sflag [#allocation10], %s432
        %s434 = sand.u32 %s159, 1
        %s435 = smul.addr %s434, 32
        %s436 = scalar_lea.vmem [#allocation15], %s435
        // Predicated region
        $region69: #{tpu_custom_call.1} parent=47 // pred_check
          %p437 = pneg %p172
        $region70: #{tpu_custom_call.1} parent=47 // pred_check_branch
          %439 = sbr.rel (%p437) target = $region72
        $region71: #{tpu_custom_call.1} parent=47 // pred_region
          %441 = dma.done %s433, 512
        $region72: #{tpu_custom_call.1} parent=47 // pred_fallthru
          _
        %p442 = pneg %p47
        %p443 = pneg %p44
        %s444 = sand.u32 %s31, 1
        %s445 = scalar_lea.sflag [#allocation10], %s444
        %s446 = sand.u32 %s60, 1
        %s447 = smul.addr %s446, 2
        %s448 = scalar_lea.vmem [#allocation9], %s447
        %p449 = pneg %p73
        %p450 = pneg %p70
        %s451 = sand.u32 %s31, 1
        %s452 = scalar_lea.sflag [#allocation10], %s451
        %s453 = sand.u32 %s86, 1
        %s454 = smul.addr %s453, 2
        %s455 = scalar_lea.vmem [#allocation11], %s454
        %p456 = pneg %p99
        %p457 = pneg %p96
        %p458 = pneg %p120
        %p459 = pneg %p117
        %s460 = sand.u32 %s31, 1
        %s461 = scalar_lea.sflag [#allocation7], %s460
        %s462 = sand.u32 %s133, 1
        %s463 = smul.addr %s462, 32
        %s464 = scalar_lea.vmem [#allocation14], %s463
        %p465 = pneg %p146
        %p466 = pneg %p143
        %s467 = sand.u32 %s31, 1
        %s468 = scalar_lea.sflag [#allocation10], %s467
        %s469 = sand.u32 %s159, 1
        %s470 = smul.addr %s469, 32
        %s471 = scalar_lea.vmem [#allocation15], %s470
        %p472 = pneg %p172
        %p473 = pneg %p169
        %p474 = scmp.lt.s32.totalorder %s31, 1
        %s475 = scalar_select %p474, %s31, 1
        %s476 = scalar_lea.vmem %s6, %s475
        %p477 = pneg %p198
        %p478 = pneg %p195
        %p479 = pneg %p224
        %p480 = pneg %p221
        %s481 = sand.u32 %s211, 1
        %s482 = scalar_lea.sflag [#allocation8], %s481
        %s483 = sand.u32 %s211, 1
        %s484 = smul.addr %s483, 2
        %s485 = scalar_lea.vmem [#allocation16], %s484
        %p486 = pneg %p250
        %p487 = pneg %p247
        %s488 = sand.u32 %s237, 1
        %s489 = scalar_lea.sflag [#allocation18], %s488
        %s490 = sand.u32 %s237, 1
        %s491 = smul.addr %s490, 2
        %s492 = scalar_lea.vmem [#allocation17], %s491
        %p493 = scmp.lt.s32.totalorder %s31, 1
        %s494 = scalar_select %p493, %s31, 1
        %s495 = scalar_lea.vmem %s6, %s494
        %v496 = vld [vmem:[%s401] sm:$0x3]
        %vm497 = vcmask 254976
        %498 = vst.msk [vmem:[#allocation4] sm:$0x3] %vm497, %v496
        %v499 = vld [vmem:[%s411] sm:$0x3]
        %500 = vst.msk [vmem:[#allocation5] sm:$0x3] %vm497, %v499
        %v501 = vld [vmem:[%s436] sm:$0xff]
        %v502 = vld [vmem:[%s436 + $0x8] sm:$0xff]
        %v503 = vld [vmem:[%s436 + $0x10] sm:$0xff]
        %v504 = vld [vmem:[%s436 + $0x18] sm:$0xff]
        %v505 = vld [vmem:[%s495] sm:$0x1]
        %p506 = scmp.eq.s32.totalorder %s31, 0
        // Predicated region
        $region73: #{tpu_custom_call.1} parent=47 // pred_check
          %p507 = pneg %p506
        $region74: #{tpu_custom_call.1} parent=47 // pred_check_branch
          %509 = sbr.rel (%p507) target = $region76
        $region75: #{tpu_custom_call.1} parent=47 // pred_region
          %v510 = vld [vmem:[#allocation6] sm:$0xff]
          %v511 = vld [vmem:[#allocation6 + $0x8] sm:$0xff]
          %v512 = vld [vmem:[#allocation12] sm:$0xff]
          %v513 = vld [vmem:[#allocation12 + $0x8] sm:$0xff]
          %v514 = vld [vmem:[#allocation12 + $0x10] sm:$0xff]
          %v515 = vld [vmem:[#allocation12 + $0x18] sm:$0xff]
          %v517 = vperm.slane %v505, 0
          %vm519 = vcmask 261120
          %v521 = vsel %vm519, %v510, 0
          %v524 = vsel %vm519, %v511, 0
          %526 = vmatpush.msra.mxu0 0.0
          %527 = vmatpush.msra.mxu0 0.0
          %528 = vmatpush.msra.mxu0 0.0
          %529 = vmatpush.msra.mxu0 0.0
          %530 = vmatpush.msra.mxu0 0.0
          %531 = vmatpush.msra.mxu0 0.0
          %532 = vmatpush.msra.mxu0 0.0
          %533 = vmatpush.msra.mxu0 0.0
          %534 = vmatpush.msra.mxu0 0.0
          %535 = vmatpush.msra.mxu0 0.0
          %536 = vmatpush.msra.mxu0 0.0
          %537 = vmatpush.msra.mxu0 0.0
          %538 = vmatpush.msra.mxu0 %v515
          %539 = vmatpush.msra.mxu0 %v514
          %540 = vmatpush.msra.mxu0 %v513
          %541 = vmatpush.msra.mxu0 %v512
          %542 = vmatmul.f32.gmra.mxu0 %v521
          %v543 = vpop.f32.mrf.mxu0
          %v544 = vadd.f32 %v517, %v543
          %545 = vmatmul.f32.gmra.mxu0 %v524
          %v546 = vpop.f32.mrf.mxu0
          %v547 = vadd.f32 %v517, %v546
          %548 = vdwg.mxu0
          %549 = vst [vmem:[#allocation3] sm:$0xff] %v544
          %550 = vst [vmem:[#allocation3 + $0x8] sm:$0xff] %v547
        $region76: #{tpu_custom_call.1} parent=47 // pred_fallthru
          _
        %p551 = scmp.ne.s32.totalorder %s31, 0
        // Predicated region
        $region77: #{tpu_custom_call.1} parent=47 // pred_check
          %p552 = pneg %p551
        $region78: #{tpu_custom_call.1} parent=47 // pred_check_branch
          %554 = sbr.rel (%p552) target = $region80
        $region79: #{tpu_custom_call.1} parent=47 // pred_region
          %v555 = vld [vmem:[#allocation2] sm:$0xff]
          %v556 = vld [vmem:[#allocation2 + $0x8] sm:$0xff]
          %v557 = vld [vmem:[%s426] sm:$0xff]
          %v558 = vld [vmem:[%s426 + $0x8] sm:$0xff]
          %v559 = vld [vmem:[%s426 + $0x10] sm:$0xff]
          %v560 = vld [vmem:[%s426 + $0x18] sm:$0xff]
          %v562 = vperm.slane %v505, 0
          %vm564 = vcmask 261120
          %v566 = vsel %vm564, %v555, 0
          %v569 = vsel %vm564, %v556, 0
          %571 = vmatpush.msra.mxu0 0.0
          %572 = vmatpush.msra.mxu0 0.0
          %573 = vmatpush.msra.mxu0 0.0
          %574 = vmatpush.msra.mxu0 0.0
          %575 = vmatpush.msra.mxu0 0.0
          %576 = vmatpush.msra.mxu0 0.0
          %577 = vmatpush.msra.mxu0 0.0
          %578 = vmatpush.msra.mxu0 0.0
          %579 = vmatpush.msra.mxu0 0.0
          %580 = vmatpush.msra.mxu0 0.0
          %581 = vmatpush.msra.mxu0 0.0
          %582 = vmatpush.msra.mxu0 0.0
          %583 = vmatpush.msra.mxu0 %v560
          %584 = vmatpush.msra.mxu0 %v559
          %585 = vmatpush.msra.mxu0 %v558
          %586 = vmatpush.msra.mxu0 %v557
          %587 = vmatmul.f32.gmra.mxu0 %v566
          %v588 = vpop.f32.mrf.mxu0
          %v589 = vadd.f32 %v562, %v588
          %590 = vmatmul.f32.gmra.mxu0 %v569
          %v591 = vpop.f32.mrf.mxu0
          %v592 = vadd.f32 %v562, %v591
          %593 = vdwg.mxu0
          %594 = vst [vmem:[#allocation3] sm:$0xff] %v589
          %595 = vst [vmem:[#allocation3 + $0x8] sm:$0xff] %v592
        $region80: #{tpu_custom_call.1} parent=47 // pred_fallthru
          _
        %v596 = vld [vmem:[#allocation3] sm:$0x3]
        %v597 = vld [vmem:[#allocation4] sm:$0x3]
        %vm598 = vcmask 261120
        %v600 = vsel %vm598, %v597, 0
        %602 = vmatpush.msra.mxu0 0.0
        %603 = vmatpush.msra.mxu0 0.0
        %604 = vmatpush.msra.mxu0 0.0
        %605 = vmatpush.msra.mxu0 0.0
        %606 = vmatpush.msra.mxu0 0.0
        %607 = vmatpush.msra.mxu0 0.0
        %608 = vmatpush.msra.mxu0 0.0
        %609 = vmatpush.msra.mxu0 0.0
        %610 = vmatpush.msra.mxu0 0.0
        %611 = vmatpush.msra.mxu0 0.0
        %612 = vmatpush.msra.mxu0 0.0
        %613 = vmatpush.msra.mxu0 0.0
        %614 = vmatpush.msra.mxu0 %v504
        %615 = vmatpush.msra.mxu0 %v503
        %616 = vmatpush.msra.mxu0 %v502
        %617 = vmatpush.msra.mxu0 %v501
        %618 = vmatmul.f32.gmra.mxu0 %v600
        %v619 = vpop.f32.mrf.mxu0
        %v620 = vadd.f32 0.0, %v619
        %621 = vdwg.mxu0
        %v622 = vadd.f32 %v596, %v620
        %v623 = vxor.u32 %v622, 2147483648
        %v624 = vmul.f32 %v623, 1.442695
        %v625 = vpow.pop %v624
        %v626 = vadd.f32 %v625, 1.0
        %v627 = vrcp.pop %v626
        %v628 = vmul.f32 %v626, %v627
        %v629 = vsub.f32 1.0, %v628
        %v630 = vmul.f32 %v627, %v629
        %v631 = vadd.f32 %v627, %v630
        %vm632 = vweird.f32 %v626
        %vm633 = vweird.f32 %v627
        %vm634 = vmor %vm632, %vm633
        %v635 = vsel %vm634, %v627, %v631
        %v636 = vand.u32 2147483647, %v626
        %vm637 = vcmp.eq.f32.partialorder %v636, 8.507059e+37
        %v638 = vand.u32 %v626, 2147483648
        %v639 = vor.u32 1.1754944e-38, %v638
        %v640 = vsel %vm637, %v639, %v635
        %v641 = vmul.f32 1.0, %v640
        %v642 = vtanh.pop %v622
        %v643 = vld [vmem:[#allocation5] sm:$0x3]
        %645 = vrot.lane.b32.xlu0 %v643, 32
        %v646 = vpop.permute.xlu0 %645
        %v648 = vmul.f32 %v641, %v646
        %650 = vrot.lane.b32.xlu0 %v642, 64
        %v651 = vpop.permute.xlu0 %650
        %v653 = vmul.f32 %v641, %v651
        %655 = vrot.lane.b32.xlu0 %v653, 32
        %v656 = vpop.permute.xlu0 %655
        %v658 = vadd.f32 %v648, %v656
        %v659 = vtanh.pop %v658
        %661 = vrot.lane.b32.xlu0 %v659, 64
        %v662 = vpop.permute.xlu0 %661
        %v664 = vmul.f32 %v641, %v662
        %666 = vrot.lane.b32.xlu0 %v664, 32
        %v667 = vpop.permute.xlu0 %666
        %669 = vst.msk [vmem:[#allocation4] sm:$0x3] %vm497, %v667
        %671 = vrot.lane.b32.xlu0 %v658, 96
        %v672 = vpop.permute.xlu0 %671
        %674 = vst.msk [vmem:[#allocation5] sm:$0x3] %vm497, %v672
        %675 = vst.msk [vmem:[#allocation2] sm:$0x3] %vm497, %v667
        %v676 = vld [vmem:[#allocation3 + $0x2] sm:$0x3]
        %v677 = vld [vmem:[#allocation4] sm:$0x3]
        %v679 = vsel %vm598, %v677, 0
        %681 = vmatpush.msra.mxu0 0.0
        %682 = vmatpush.msra.mxu0 0.0
        %683 = vmatpush.msra.mxu0 0.0
        %684 = vmatpush.msra.mxu0 0.0
        %685 = vmatpush.msra.mxu0 0.0
        %686 = vmatpush.msra.mxu0 0.0
        %687 = vmatpush.msra.mxu0 0.0
        %688 = vmatpush.msra.mxu0 0.0
        %689 = vmatpush.msra.mxu0 0.0
        %690 = vmatpush.msra.mxu0 0.0
        %691 = vmatpush.msra.mxu0 0.0
        %692 = vmatpush.msra.mxu0 0.0
        %693 = vmatpush.msra.mxu0 %v504
        %694 = vmatpush.msra.mxu0 %v503
        %695 = vmatpush.msra.mxu0 %v502
        %696 = vmatpush.msra.mxu0 %v501
        %697 = vmatmul.f32.gmra.mxu0 %v679
        %v698 = vpop.f32.mrf.mxu0
        %v699 = vadd.f32 0.0, %v698
        %700 = vdwg.mxu0
        %v701 = vadd.f32 %v676, %v699
        %v702 = vxor.u32 %v701, 2147483648
        %v703 = vmul.f32 %v702, 1.442695
        %v704 = vpow.pop %v703
        %v705 = vadd.f32 %v704, 1.0
        %v706 = vrcp.pop %v705
        %v707 = vmul.f32 %v705, %v706
        %v708 = vsub.f32 1.0, %v707
        %v709 = vmul.f32 %v706, %v708
        %v710 = vadd.f32 %v706, %v709
        %vm711 = vweird.f32 %v705
        %vm712 = vweird.f32 %v706
        %vm713 = vmor %vm711, %vm712
        %v714 = vsel %vm713, %v706, %v710
        %v715 = vand.u32 2147483647, %v705
        %vm716 = vcmp.eq.f32.partialorder %v715, 8.507059e+37
        %v717 = vand.u32 %v705, 2147483648
        %v718 = vor.u32 1.1754944e-38, %v717
        %v719 = vsel %vm716, %v718, %v714
        %v720 = vmul.f32 1.0, %v719
        %v721 = vtanh.pop %v701
        %v722 = vld [vmem:[#allocation5] sm:$0x3]
        %724 = vrot.lane.b32.xlu0 %v722, 32
        %v725 = vpop.permute.xlu0 %724
        %v727 = vmul.f32 %v720, %v725
        %729 = vrot.lane.b32.xlu0 %v721, 64
        %v730 = vpop.permute.xlu0 %729
        %v732 = vmul.f32 %v720, %v730
        %734 = vrot.lane.b32.xlu0 %v732, 32
        %v735 = vpop.permute.xlu0 %734
        %v737 = vadd.f32 %v727, %v735
        %v738 = vtanh.pop %v737
        %740 = vrot.lane.b32.xlu0 %v738, 64
        %v741 = vpop.permute.xlu0 %740
        %v743 = vmul.f32 %v720, %v741
        %745 = vrot.lane.b32.xlu0 %v743, 32
        %v746 = vpop.permute.xlu0 %745
        %748 = vst.msk [vmem:[#allocation4] sm:$0x3] %vm497, %v746
        %750 = vrot.lane.b32.xlu0 %v737, 96
        %v751 = vpop.permute.xlu0 %750
        %753 = vst.msk [vmem:[#allocation5] sm:$0x3] %vm497, %v751
        %754 = vst.msk [vmem:[#allocation2 + $0x2] sm:$0x3] %vm497, %v746
        %v755 = vld [vmem:[#allocation3 + $0x4] sm:$0x3]
        %v756 = vld [vmem:[#allocation4] sm:$0x3]
        %v758 = vsel %vm598, %v756, 0
        %760 = vmatpush.msra.mxu0 0.0
        %761 = vmatpush.msra.mxu0 0.0
        %762 = vmatpush.msra.mxu0 0.0
        %763 = vmatpush.msra.mxu0 0.0
        %764 = vmatpush.msra.mxu0 0.0
        %765 = vmatpush.msra.mxu0 0.0
        %766 = vmatpush.msra.mxu0 0.0
        %767 = vmatpush.msra.mxu0 0.0
        %768 = vmatpush.msra.mxu0 0.0
        %769 = vmatpush.msra.mxu0 0.0
        %770 = vmatpush.msra.mxu0 0.0
        %771 = vmatpush.msra.mxu0 0.0
        %772 = vmatpush.msra.mxu0 %v504
        %773 = vmatpush.msra.mxu0 %v503
        %774 = vmatpush.msra.mxu0 %v502
        %775 = vmatpush.msra.mxu0 %v501
        %776 = vmatmul.f32.gmra.mxu0 %v758
        %v777 = vpop.f32.mrf.mxu0
        %v778 = vadd.f32 0.0, %v777
        %779 = vdwg.mxu0
        %v780 = vadd.f32 %v755, %v778
        %v781 = vxor.u32 %v780, 2147483648
        %v782 = vmul.f32 %v781, 1.442695
        %v783 = vpow.pop %v782
        %v784 = vadd.f32 %v783, 1.0
        %v785 = vrcp.pop %v784
        %v786 = vmul.f32 %v784, %v785
        %v787 = vsub.f32 1.0, %v786
        %v788 = vmul.f32 %v785, %v787
        %v789 = vadd.f32 %v785, %v788
        %vm790 = vweird.f32 %v784
        %vm791 = vweird.f32 %v785
        %vm792 = vmor %vm790, %vm791
        %v793 = vsel %vm792, %v785, %v789
        %v794 = vand.u32 2147483647, %v784
        %vm795 = vcmp.eq.f32.partialorder %v794, 8.507059e+37
        %v796 = vand.u32 %v784, 2147483648
        %v797 = vor.u32 1.1754944e-38, %v796
        %v798 = vsel %vm795, %v797, %v793
        %v799 = vmul.f32 1.0, %v798
        %v800 = vtanh.pop %v780
        %v801 = vld [vmem:[#allocation5] sm:$0x3]
        %803 = vrot.lane.b32.xlu0 %v801, 32
        %v804 = vpop.permute.xlu0 %803
        %v806 = vmul.f32 %v799, %v804
        %808 = vrot.lane.b32.xlu0 %v800, 64
        %v809 = vpop.permute.xlu0 %808
        %v811 = vmul.f32 %v799, %v809
        %813 = vrot.lane.b32.xlu0 %v811, 32
        %v814 = vpop.permute.xlu0 %813
        %v816 = vadd.f32 %v806, %v814
        %v817 = vtanh.pop %v816
        %819 = vrot.lane.b32.xlu0 %v817, 64
        %v820 = vpop.permute.xlu0 %819
        %v822 = vmul.f32 %v799, %v820
        %824 = vrot.lane.b32.xlu0 %v822, 32
        %v825 = vpop.permute.xlu0 %824
        %827 = vst.msk [vmem:[#allocation4] sm:$0x3] %vm497, %v825
        %829 = vrot.lane.b32.xlu0 %v816, 96
        %v830 = vpop.permute.xlu0 %829
        %832 = vst.msk [vmem:[#allocation5] sm:$0x3] %vm497, %v830
        %833 = vst.msk [vmem:[#allocation2 + $0x4] sm:$0x3] %vm497, %v825
        %v834 = vld [vmem:[#allocation3 + $0x6] sm:$0x3]
        %v835 = vld [vmem:[#allocation4] sm:$0x3]
        %v837 = vsel %vm598, %v835, 0
        %839 = vmatpush.msra.mxu0 0.0
        %840 = vmatpush.msra.mxu0 0.0
        %841 = vmatpush.msra.mxu0 0.0
        %842 = vmatpush.msra.mxu0 0.0
        %843 = vmatpush.msra.mxu0 0.0
        %844 = vmatpush.msra.mxu0 0.0
        %845 = vmatpush.msra.mxu0 0.0
        %846 = vmatpush.msra.mxu0 0.0
        %847 = vmatpush.msra.mxu0 0.0
        %848 = vmatpush.msra.mxu0 0.0
        %849 = vmatpush.msra.mxu0 0.0
        %850 = vmatpush.msra.mxu0 0.0
        %851 = vmatpush.msra.mxu0 %v504
        %852 = vmatpush.msra.mxu0 %v503
        %853 = vmatpush.msra.mxu0 %v502
        %854 = vmatpush.msra.mxu0 %v501
        %855 = vmatmul.f32.gmra.mxu0 %v837
        %v856 = vpop.f32.mrf.mxu0
        %v857 = vadd.f32 0.0, %v856
        %858 = vdwg.mxu0
        %v859 = vadd.f32 %v834, %v857
        %v860 = vxor.u32 %v859, 2147483648
        %v861 = vmul.f32 %v860, 1.442695
        %v862 = vpow.pop %v861
        %v863 = vadd.f32 %v862, 1.0
        %v864 = vrcp.pop %v863
        %v865 = vmul.f32 %v863, %v864
        %v866 = vsub.f32 1.0, %v865
        %v867 = vmul.f32 %v864, %v866
        %v868 = vadd.f32 %v864, %v867
        %vm869 = vweird.f32 %v863
        %vm870 = vweird.f32 %v864
        %vm871 = vmor %vm869, %vm870
        %v872 = vsel %vm871, %v864, %v868
        %v873 = vand.u32 2147483647, %v863
        %vm874 = vcmp.eq.f32.partialorder %v873, 8.507059e+37
        %v875 = vand.u32 %v863, 2147483648
        %v876 = vor.u32 1.1754944e-38, %v875
        %v877 = vsel %vm874, %v876, %v872
        %v878 = vmul.f32 1.0, %v877
        %v879 = vtanh.pop %v859
        %v880 = vld [vmem:[#allocation5] sm:$0x3]
        %882 = vrot.lane.b32.xlu0 %v880, 32
        %v883 = vpop.permute.xlu0 %882
        %v885 = vmul.f32 %v878, %v883
        %887 = vrot.lane.b32.xlu0 %v879, 64
        %v888 = vpop.permute.xlu0 %887
        %v890 = vmul.f32 %v878, %v888
        %892 = vrot.lane.b32.xlu0 %v890, 32
        %v893 = vpop.permute.xlu0 %892
        %v895 = vadd.f32 %v885, %v893
        %v896 = vtanh.pop %v895
        %898 = vrot.lane.b32.xlu0 %v896, 64
        %v899 = vpop.permute.xlu0 %898
        %v901 = vmul.f32 %v878, %v899
        %903 = vrot.lane.b32.xlu0 %v901, 32
        %v904 = vpop.permute.xlu0 %903
        %906 = vst.msk [vmem:[#allocation4] sm:$0x3] %vm497, %v904
        %908 = vrot.lane.b32.xlu0 %v895, 96
        %v909 = vpop.permute.xlu0 %908
        %911 = vst.msk [vmem:[#allocation5] sm:$0x3] %vm497, %v909
        %912 = vst.msk [vmem:[#allocation2 + $0x6] sm:$0x3] %vm497, %v904
        %v913 = vld [vmem:[#allocation3 + $0x8] sm:$0x3]
        %v914 = vld [vmem:[#allocation4] sm:$0x3]
        %v916 = vsel %vm598, %v914, 0
        %918 = vmatpush.msra.mxu0 0.0
        %919 = vmatpush.msra.mxu0 0.0
        %920 = vmatpush.msra.mxu0 0.0
        %921 = vmatpush.msra.mxu0 0.0
        %922 = vmatpush.msra.mxu0 0.0
        %923 = vmatpush.msra.mxu0 0.0
        %924 = vmatpush.msra.mxu0 0.0
        %925 = vmatpush.msra.mxu0 0.0
        %926 = vmatpush.msra.mxu0 0.0
        %927 = vmatpush.msra.mxu0 0.0
        %928 = vmatpush.msra.mxu0 0.0
        %929 = vmatpush.msra.mxu0 0.0
        %930 = vmatpush.msra.mxu0 %v504
        %931 = vmatpush.msra.mxu0 %v503
        %932 = vmatpush.msra.mxu0 %v502
        %933 = vmatpush.msra.mxu0 %v501
        %934 = vmatmul.f32.gmra.mxu0 %v916
        %v935 = vpop.f32.mrf.mxu0
        %v936 = vadd.f32 0.0, %v935
        %937 = vdwg.mxu0
        %v938 = vadd.f32 %v913, %v936
        %v939 = vxor.u32 %v938, 2147483648
        %v940 = vmul.f32 %v939, 1.442695
        %v941 = vpow.pop %v940
        %v942 = vadd.f32 %v941, 1.0
        %v943 = vrcp.pop %v942
        %v944 = vmul.f32 %v942, %v943
        %v945 = vsub.f32 1.0, %v944
        %v946 = vmul.f32 %v943, %v945
        %v947 = vadd.f32 %v943, %v946
        %vm948 = vweird.f32 %v942
        %vm949 = vweird.f32 %v943
        %vm950 = vmor %vm948, %vm949
        %v951 = vsel %vm950, %v943, %v947
        %v952 = vand.u32 2147483647, %v942
        %vm953 = vcmp.eq.f32.partialorder %v952, 8.507059e+37
        %v954 = vand.u32 %v942, 2147483648
        %v955 = vor.u32 1.1754944e-38, %v954
        %v956 = vsel %vm953, %v955, %v951
        %v957 = vmul.f32 1.0, %v956
        %v958 = vtanh.pop %v938
        %v959 = vld [vmem:[#allocation5] sm:$0x3]
        %961 = vrot.lane.b32.xlu0 %v959, 32
        %v962 = vpop.permute.xlu0 %961
        %v964 = vmul.f32 %v957, %v962
        %966 = vrot.lane.b32.xlu0 %v958, 64
        %v967 = vpop.permute.xlu0 %966
        %v969 = vmul.f32 %v957, %v967
        %971 = vrot.lane.b32.xlu0 %v969, 32
        %v972 = vpop.permute.xlu0 %971
        %v974 = vadd.f32 %v964, %v972
        %v975 = vtanh.pop %v974
        %977 = vrot.lane.b32.xlu0 %v975, 64
        %v978 = vpop.permute.xlu0 %977
        %v980 = vmul.f32 %v957, %v978
        %982 = vrot.lane.b32.xlu0 %v980, 32
        %v983 = vpop.permute.xlu0 %982
        %985 = vst.msk [vmem:[#allocation4] sm:$0x3] %vm497, %v983
        %987 = vrot.lane.b32.xlu0 %v974, 96
        %v988 = vpop.permute.xlu0 %987
        %990 = vst.msk [vmem:[#allocation5] sm:$0x3] %vm497, %v988
        %991 = vst.msk [vmem:[#allocation2 + $0x8] sm:$0x3] %vm497, %v983
        %v992 = vld [vmem:[#allocation3 + $0xa] sm:$0x3]
        %v993 = vld [vmem:[#allocation4] sm:$0x3]
        %v995 = vsel %vm598, %v993, 0
        %997 = vmatpush.msra.mxu0 0.0
        %998 = vmatpush.msra.mxu0 0.0
        %999 = vmatpush.msra.mxu0 0.0
        %1000 = vmatpush.msra.mxu0 0.0
        %1001 = vmatpush.msra.mxu0 0.0
        %1002 = vmatpush.msra.mxu0 0.0
        %1003 = vmatpush.msra.mxu0 0.0
        %1004 = vmatpush.msra.mxu0 0.0
        %1005 = vmatpush.msra.mxu0 0.0
        %1006 = vmatpush.msra.mxu0 0.0
        %1007 = vmatpush.msra.mxu0 0.0
        %1008 = vmatpush.msra.mxu0 0.0
        %1009 = vmatpush.msra.mxu0 %v504
        %1010 = vmatpush.msra.mxu0 %v503
        %1011 = vmatpush.msra.mxu0 %v502
        %1012 = vmatpush.msra.mxu0 %v501
        %1013 = vmatmul.f32.gmra.mxu0 %v995
        %v1014 = vpop.f32.mrf.mxu0
        %v1015 = vadd.f32 0.0, %v1014
        %1016 = vdwg.mxu0
        %v1017 = vadd.f32 %v992, %v1015
        %v1018 = vxor.u32 %v1017, 2147483648
        %v1019 = vmul.f32 %v1018, 1.442695
        %v1020 = vpow.pop %v1019
        %v1021 = vadd.f32 %v1020, 1.0
        %v1022 = vrcp.pop %v1021
        %v1023 = vmul.f32 %v1021, %v1022
        %v1024 = vsub.f32 1.0, %v1023
        %v1025 = vmul.f32 %v1022, %v1024
        %v1026 = vadd.f32 %v1022, %v1025
        %vm1027 = vweird.f32 %v1021
        %vm1028 = vweird.f32 %v1022
        %vm1029 = vmor %vm1027, %vm1028
        %v1030 = vsel %vm1029, %v1022, %v1026
        %v1031 = vand.u32 2147483647, %v1021
        %vm1032 = vcmp.eq.f32.partialorder %v1031, 8.507059e+37
        %v1033 = vand.u32 %v1021, 2147483648
        %v1034 = vor.u32 1.1754944e-38, %v1033
        %v1035 = vsel %vm1032, %v1034, %v1030
        %v1036 = vmul.f32 1.0, %v1035
        %v1037 = vtanh.pop %v1017
        %v1038 = vld [vmem:[#allocation5] sm:$0x3]
        %1040 = vrot.lane.b32.xlu0 %v1038, 32
        %v1041 = vpop.permute.xlu0 %1040
        %v1043 = vmul.f32 %v1036, %v1041
        %1045 = vrot.lane.b32.xlu0 %v1037, 64
        %v1046 = vpop.permute.xlu0 %1045
        %v1048 = vmul.f32 %v1036, %v1046
        %1050 = vrot.lane.b32.xlu0 %v1048, 32
        %v1051 = vpop.permute.xlu0 %1050
        %v1053 = vadd.f32 %v1043, %v1051
        %v1054 = vtanh.pop %v1053
        %1056 = vrot.lane.b32.xlu0 %v1054, 64
        %v1057 = vpop.permute.xlu0 %1056
        %v1059 = vmul.f32 %v1036, %v1057
        %1061 = vrot.lane.b32.xlu0 %v1059, 32
        %v1062 = vpop.permute.xlu0 %1061
        %1064 = vst.msk [vmem:[#allocation4] sm:$0x3] %vm497, %v1062
        %1066 = vrot.lane.b32.xlu0 %v1053, 96
        %v1067 = vpop.permute.xlu0 %1066
        %1069 = vst.msk [vmem:[#allocation5] sm:$0x3] %vm497, %v1067
        %1070 = vst.msk [vmem:[#allocation2 + $0xa] sm:$0x3] %vm497, %v1062
        %v1071 = vld [vmem:[#allocation3 + $0xc] sm:$0x3]
        %v1072 = vld [vmem:[#allocation4] sm:$0x3]
        %v1074 = vsel %vm598, %v1072, 0
        %1076 = vmatpush.msra.mxu0 0.0
        %1077 = vmatpush.msra.mxu0 0.0
        %1078 = vmatpush.msra.mxu0 0.0
        %1079 = vmatpush.msra.mxu0 0.0
        %1080 = vmatpush.msra.mxu0 0.0
        %1081 = vmatpush.msra.mxu0 0.0
        %1082 = vmatpush.msra.mxu0 0.0
        %1083 = vmatpush.msra.mxu0 0.0
        %1084 = vmatpush.msra.mxu0 0.0
        %1085 = vmatpush.msra.mxu0 0.0
        %1086 = vmatpush.msra.mxu0 0.0
        %1087 = vmatpush.msra.mxu0 0.0
        %1088 = vmatpush.msra.mxu0 %v504
        %1089 = vmatpush.msra.mxu0 %v503
        %1090 = vmatpush.msra.mxu0 %v502
        %1091 = vmatpush.msra.mxu0 %v501
        %1092 = vmatmul.f32.gmra.mxu0 %v1074
        %v1093 = vpop.f32.mrf.mxu0
        %v1094 = vadd.f32 0.0, %v1093
        %1095 = vdwg.mxu0
        %v1096 = vadd.f32 %v1071, %v1094
        %v1097 = vxor.u32 %v1096, 2147483648
        %v1098 = vmul.f32 %v1097, 1.442695
        %v1099 = vpow.pop %v1098
        %v1100 = vadd.f32 %v1099, 1.0
        %v1101 = vrcp.pop %v1100
        %v1102 = vmul.f32 %v1100, %v1101
        %v1103 = vsub.f32 1.0, %v1102
        %v1104 = vmul.f32 %v1101, %v1103
        %v1105 = vadd.f32 %v1101, %v1104
        %vm1106 = vweird.f32 %v1100
        %vm1107 = vweird.f32 %v1101
        %vm1108 = vmor %vm1106, %vm1107
        %v1109 = vsel %vm1108, %v1101, %v1105
        %v1110 = vand.u32 2147483647, %v1100
        %vm1111 = vcmp.eq.f32.partialorder %v1110, 8.507059e+37
        %v1112 = vand.u32 %v1100, 2147483648
        %v1113 = vor.u32 1.1754944e-38, %v1112
        %v1114 = vsel %vm1111, %v1113, %v1109
        %v1115 = vmul.f32 1.0, %v1114
        %v1116 = vtanh.pop %v1096
        %v1117 = vld [vmem:[#allocation5] sm:$0x3]
        %1119 = vrot.lane.b32.xlu0 %v1117, 32
        %v1120 = vpop.permute.xlu0 %1119
        %v1122 = vmul.f32 %v1115, %v1120
        %1124 = vrot.lane.b32.xlu0 %v1116, 64
        %v1125 = vpop.permute.xlu0 %1124
        %v1127 = vmul.f32 %v1115, %v1125
        %1129 = vrot.lane.b32.xlu0 %v1127, 32
        %v1130 = vpop.permute.xlu0 %1129
        %v1132 = vadd.f32 %v1122, %v1130
        %v1133 = vtanh.pop %v1132
        %1135 = vrot.lane.b32.xlu0 %v1133, 64
        %v1136 = vpop.permute.xlu0 %1135
        %v1138 = vmul.f32 %v1115, %v1136
        %1140 = vrot.lane.b32.xlu0 %v1138, 32
        %v1141 = vpop.permute.xlu0 %1140
        %1143 = vst.msk [vmem:[#allocation4] sm:$0x3] %vm497, %v1141
        %1145 = vrot.lane.b32.xlu0 %v1132, 96
        %v1146 = vpop.permute.xlu0 %1145
        %1148 = vst.msk [vmem:[#allocation5] sm:$0x3] %vm497, %v1146
        %1149 = vst.msk [vmem:[#allocation2 + $0xc] sm:$0x3] %vm497, %v1141
        %v1150 = vld [vmem:[#allocation3 + $0xe] sm:$0x3]
        %v1151 = vld [vmem:[#allocation4] sm:$0x3]
        %v1153 = vsel %vm598, %v1151, 0
        %1155 = vmatpush.msra.mxu0 0.0
        %1156 = vmatpush.msra.mxu0 0.0
        %1157 = vmatpush.msra.mxu0 0.0
        %1158 = vmatpush.msra.mxu0 0.0
        %1159 = vmatpush.msra.mxu0 0.0
        %1160 = vmatpush.msra.mxu0 0.0
        %1161 = vmatpush.msra.mxu0 0.0
        %1162 = vmatpush.msra.mxu0 0.0
        %1163 = vmatpush.msra.mxu0 0.0
        %1164 = vmatpush.msra.mxu0 0.0
        %1165 = vmatpush.msra.mxu0 0.0
        %1166 = vmatpush.msra.mxu0 0.0
        %1167 = vmatpush.msra.mxu0 %v504
        %1168 = vmatpush.msra.mxu0 %v503
        %1169 = vmatpush.msra.mxu0 %v502
        %1170 = vmatpush.msra.mxu0 %v501
        %1171 = vmatmul.f32.gmra.mxu0 %v1153
        %v1172 = vpop.f32.mrf.mxu0
        %v1173 = vadd.f32 0.0, %v1172
        %1174 = vdwg.mxu0
        %v1175 = vadd.f32 %v1150, %v1173
        %v1176 = vxor.u32 %v1175, 2147483648
        %v1177 = vmul.f32 %v1176, 1.442695
        %v1178 = vpow.pop %v1177
        %v1179 = vadd.f32 %v1178, 1.0
        %v1180 = vrcp.pop %v1179
        %v1181 = vmul.f32 %v1179, %v1180
        %v1182 = vsub.f32 1.0, %v1181
        %v1183 = vmul.f32 %v1180, %v1182
        %v1184 = vadd.f32 %v1180, %v1183
        %vm1185 = vweird.f32 %v1179
        %vm1186 = vweird.f32 %v1180
        %vm1187 = vmor %vm1185, %vm1186
        %v1188 = vsel %vm1187, %v1180, %v1184
        %v1189 = vand.u32 2147483647, %v1179
        %vm1190 = vcmp.eq.f32.partialorder %v1189, 8.507059e+37
        %v1191 = vand.u32 %v1179, 2147483648
        %v1192 = vor.u32 1.1754944e-38, %v1191
        %v1193 = vsel %vm1190, %v1192, %v1188
        %v1194 = vmul.f32 1.0, %v1193
        %v1195 = vtanh.pop %v1175
        %v1196 = vld [vmem:[#allocation5] sm:$0x3]
        %1198 = vrot.lane.b32.xlu0 %v1196, 32
        %v1199 = vpop.permute.xlu0 %1198
        %v1201 = vmul.f32 %v1194, %v1199
        %1203 = vrot.lane.b32.xlu0 %v1195, 64
        %v1204 = vpop.permute.xlu0 %1203
        %v1206 = vmul.f32 %v1194, %v1204
        %1208 = vrot.lane.b32.xlu0 %v1206, 32
        %v1209 = vpop.permute.xlu0 %1208
        %v1211 = vadd.f32 %v1201, %v1209
        %v1212 = vtanh.pop %v1211
        %1214 = vrot.lane.b32.xlu0 %v1212, 64
        %v1215 = vpop.permute.xlu0 %1214
        %v1217 = vmul.f32 %v1194, %v1215
        %1219 = vrot.lane.b32.xlu0 %v1217, 32
        %v1220 = vpop.permute.xlu0 %1219
        %1222 = vst.msk [vmem:[#allocation4] sm:$0x3] %vm497, %v1220
        %1224 = vrot.lane.b32.xlu0 %v1211, 96
        %v1225 = vpop.permute.xlu0 %1224
        %1227 = vst.msk [vmem:[#allocation5] sm:$0x3] %vm497, %v1225
        %1228 = vst.msk [vmem:[#allocation2 + $0xe] sm:$0x3] %vm497, %v1220
        %v1229 = vld [vmem:[#allocation4] sm:$0x3]
        %1230 = vst.msk [vmem:[%s485] sm:$0x3] %vm497, %v1229
        %v1231 = vld [vmem:[#allocation5] sm:$0x3]
        %1232 = vst.msk [vmem:[%s492] sm:$0x3] %vm497, %v1231
        %s1233 = sand.u32 %s211, 1
        %s1234 = scalar_lea.sflag [#allocation8], %s1233
        %s1235 = sand.u32 %s211, 1
        %s1236 = smul.addr %s1235, 2
        %s1237 = scalar_lea.vmem [#allocation16], %s1236
        %s1238 = sand.u32 %s237, 1
        %s1239 = scalar_lea.sflag [#allocation18], %s1238
        %s1240 = sand.u32 %s237, 1
        %s1241 = smul.addr %s1240, 2
        %s1242 = scalar_lea.vmem [#allocation17], %s1241
        // Predicated region
        $region81: #{tpu_custom_call.1} parent=47 // pred_check
          %p1243 = pneg %p221
        $region82: #{tpu_custom_call.1} parent=47 // pred_check_branch
          %1245 = sbr.rel (%p1243) target = $region84
        $region83: #{tpu_custom_call.1} parent=47 // pred_region
          %1247 = vsyncadd %s1234, 0
          %s1248 = smul.addr %s31, 2
          %s1249 = scalar_lea.hbm %s7, %s1248
          %s1251 = sshll.u32 %s1237, 4
          %s1252 = int_to_ptr.vmem [resolvable:$true] %s1251
          %s1253 = sshll.u32 %s1249, 4
          %s1254 = int_to_ptr.hbm [resolvable:$true] %s1253
          %1256 = dma.vmem_to_hbm [thread:$0]  %s1252, 32, %s1254, %s1234
        $region84: #{tpu_custom_call.1} parent=47 // pred_fallthru
          _
        // Predicated region
        $region85: #{tpu_custom_call.1} parent=47 // pred_check
          %p1257 = pneg %p247
        $region86: #{tpu_custom_call.1} parent=47 // pred_check_branch
          %1259 = sbr.rel (%p1257) target = $region88
        $region87: #{tpu_custom_call.1} parent=47 // pred_region
          %1261 = vsyncadd %s1239, 0
          %s1262 = smul.addr %s31, 2
          %s1263 = scalar_lea.hbm %s8, %s1262
          %s1265 = sshll.u32 %s1242, 4
          %s1266 = int_to_ptr.vmem [resolvable:$true] %s1265
          %s1267 = sshll.u32 %s1263, 4
          %s1268 = int_to_ptr.hbm [resolvable:$true] %s1267
          %1270 = dma.vmem_to_hbm [thread:$0]  %s1266, 32, %s1268, %s1239
        $region88: #{tpu_custom_call.1} parent=47 // pred_fallthru
          _
      $region48: #{tpu_custom_call.1} parent=5 // pred_fallthru
        _
      %p1271 = scmp.le.s32.totalorder 2, %s26
      // Predicated region
      $region89: #{tpu_custom_call.1} parent=5 // pred_check
        %p1272 = pneg %p1271
      $region90: #{tpu_custom_call.1} parent=5 // pred_check_branch
        %1274 = sbr.rel (%p1272) target = $region92
      $region91: #{tpu_custom_call.1} parent=5 // pred_region
        %s1275 = ssub.s32 %s26, 2
        // Predicated region
        $region93: #{tpu_custom_call.1} parent=91 // pred_check
          %p1276 = pneg %p227
        $region94: #{tpu_custom_call.1} parent=91 // pred_check_branch
          %1278 = sbr.rel (%p1276) target = $region96
        $region95: #{tpu_custom_call.1} parent=91 // pred_region
          %s1279 = sand.u32 %s212, 1
          %s1280 = scalar_lea.sflag [#allocation8], %s1279
          %s1281 = sand.u32 %s212, 1
          %s1282 = smul.addr %s1281, 2
          %s1283 = scalar_lea.vmem [#allocation16], %s1282
          %1285 = dma.done %s1280, 32
        $region96: #{tpu_custom_call.1} parent=91 // pred_fallthru
          _
        // Predicated region
        $region97: #{tpu_custom_call.1} parent=91 // pred_check
          %p1286 = pneg %p253
        $region98: #{tpu_custom_call.1} parent=91 // pred_check_branch
          %1288 = sbr.rel (%p1286) target = $region100
        $region99: #{tpu_custom_call.1} parent=91 // pred_region
          %s1289 = sand.u32 %s238, 1
          %s1290 = scalar_lea.sflag [#allocation18], %s1289
          %s1291 = sand.u32 %s238, 1
          %s1292 = smul.addr %s1291, 2
          %s1293 = scalar_lea.vmem [#allocation17], %s1292
          %1295 = dma.done %s1290, 32
        $region100: #{tpu_custom_call.1} parent=91 // pred_fallthru
          _
      $region92: #{tpu_custom_call.1} parent=5 // pred_fallthru
        _
    $region6: #{tpu_custom_call.1} parent=1 // loop_footer
      %s30 = sadd.s32 1, %s26
    $region7: #{tpu_custom_call.1} parent=1 // loop_footer_branch
      %25 = sbr.rel target = $region3
    $region8: #{tpu_custom_call.1} parent=1 // loop_exit
      _
    %1296 = vsyncpa [#allocation7], 1
    %s1297 = scalar_lea.sflag [#allocation7], 1
    %1298 = vsyncpa %s1297, 1
    %1299 = vsyncpa [#allocation10], 1
    %s1300 = scalar_lea.sflag [#allocation10], 1
    %1301 = vsyncpa %s1300, 1
    %1302 = vsyncpa [#allocation13], 1
    %1303 = vsyncpa [#allocation8], 1
    %s1304 = scalar_lea.sflag [#allocation8], 1
    %1305 = vsyncpa %s1304, 1
    %1306 = vsyncpa [#allocation18], 1
    %s1307 = scalar_lea.sflag [#allocation18], 1
    %1308 = vsyncpa %s1307, 1

</llo_original>
